<compile_context>
chip_gen: v7x
topology: tpu7x:2x2x1
jax: 0.10.0
libtpu: 0.0.40
codegen_flags: <defaults>
</compile_context>

<pallas_src>
import functools

import jax
import jax.numpy as jnp
from jax import lax
from jax.experimental import pallas as pl
from jax.experimental.pallas import tpu as pltpu


def _gather_strip_kernel(g_ref, l_ref, out_ref, *, D, H, W):
    """One destination strip of trilinear grid_sample (zeros padding, align_corners=True).

    g_ref:   (3, T)  absolute sample coordinates for this strip
             (row 0 = x -> W axis, row 1 = y -> H, row 2 = z -> D).
    l_ref:   (24, N) flow rolled by the 8 constant corner offsets:
             rows 3k..3k+2 hold flow[:, m + off_k], off_k = dz*H*W + dy*W + dx.
    out_ref: (3, T)  sampled flow for this strip.
    """
    N = D * H * W
    HW = H * W
    T = out_ref.shape[1]

    g = g_ref[...]
    gx, gy, gz = g[0:1, :], g[1:2, :], g[2:3, :]

    # Base (lower) corner clamped per-axis to [0, dim-2]: base and base+1 are
    # always in-bounds, so a single one-hot covers all 8 corners via the
    # constant flat offsets already baked into l_ref.
    bx = jnp.clip(jnp.floor(gx), 0.0, float(W - 2))
    by = jnp.clip(jnp.floor(gy), 0.0, float(H - 2))
    bz = jnp.clip(jnp.floor(gz), 0.0, float(D - 2))

    # Hat-function weights: exactly equivalent to per-corner fractional weights
    # with out-of-bounds corners zeroed (zeros padding), no validity masks.
    tx, ty, tz = gx - bx, gy - by, gz - bz
    wx = (jnp.maximum(0.0, 1.0 - jnp.abs(tx)),
          jnp.maximum(0.0, 1.0 - jnp.abs(tx - 1.0)))
    wy = (jnp.maximum(0.0, 1.0 - jnp.abs(ty)),
          jnp.maximum(0.0, 1.0 - jnp.abs(ty - 1.0)))
    wz = (jnp.maximum(0.0, 1.0 - jnp.abs(tz)),
          jnp.maximum(0.0, 1.0 - jnp.abs(tz - 1.0)))

    flat = (bz.astype(jnp.int32) * HW
            + by.astype(jnp.int32) * W
            + bx.astype(jnp.int32))                       # (1, T)

    # ONE one-hot gather matrix per strip (vs. 8 in the naive version).
    iota = lax.broadcasted_iota(jnp.int32, (N, T), 0)
    onehot = jnp.where(iota == flat, 1.0, 0.0)            # (N, T) f32

    # Single 24-row MXU matmul gathers all 8 corners x 3 channels at once.
    gathered = jnp.dot(l_ref[...], onehot,
                       preferred_element_type=jnp.float32)  # (24, T)

    # Combine the 8 corners with their trilinear weights on the VPU.
    corners = [(dz, dy, dx) for dz in (0, 1) for dy in (0, 1) for dx in (0, 1)]
    acc = (wz[0] * wy[0] * wx[0]) * gathered[0:3, :]
    for k, (dz, dy, dx) in enumerate(corners[1:], start=1):
        acc = acc + (wz[dz] * wy[dy] * wx[dx]) * gathered[3 * k:3 * k + 3, :]
    out_ref[...] = acc


def diffeomorphic_transform(velocity, sample_grid, time_step=7, tile_n=512):
    """velocity: (1, 3, D, H, W) f32 (NCDHW);  sample_grid: (1, D, H, W, 3) f32."""
    assert velocity.shape[0] == 1 and sample_grid.shape[0] == 1, \
        "batch=1 only (the PyTorch module normalizes only batch index 0)"
    _, C, D, H, W = velocity.shape
    assert C == 3 and min(D, H, W) >= 2
    N = D * H * W
    HW = H * W
    tile_n = min(int(tile_n), N)
    assert N % 128 == 0 and tile_n % 128 == 0 and N % tile_n == 0, \
        "D*H*W must be a multiple of 128 and divisible by tile_n"
    n_strips = N // tile_n

    # Corner order k = dz*4 + dy*2 + dx; flat-index offset of corner k from base.
    offsets = tuple(dz * HW + dy * W + dx
                    for dz in (0, 1) for dy in (0, 1) for dx in (0, 1))

    flow = (velocity.astype(jnp.float32) / (2.0 ** time_step)).reshape(3, N)
    grid2d = jnp.transpose(sample_grid[0].reshape(N, 3).astype(jnp.float32), (1, 0))

    # Scoped-VMEM budget: rolled-flow LHS (double-buffered) + iota/one-hot strip
    # + small temporaries, with 2x margin.
    vmem_need = 4 * (2 * 24 * N + 3 * N * tile_n + 64 * tile_n)
    vmem_limit = int(min(max(2 * vmem_need, 16 * 2 ** 20), 56 * 2 ** 20))

    sample = pl.pallas_call(
        functools.partial(_gather_strip_kernel, D=D, H=H, W=W),
        out_shape=jax.ShapeDtypeStruct((3, N), jnp.float32),
        grid=(n_strips,),
        in_specs=[pl.BlockSpec((3, tile_n), lambda s: (0, s)),   # coords, strip s
                  pl.BlockSpec((24, N), lambda s: (0, 0))],      # rolled flows, resident
        out_specs=pl.BlockSpec((3, tile_n), lambda s: (0, s)),
        compiler_params=pltpu.CompilerParams(
            dimension_semantics=("parallel",),   # strips independent -> 2 TCs on v7x
            vmem_limit_bytes=vmem_limit),
    )

    # Scaling-and-squaring: flow <- flow + grid_sample(flow, grid + flow).
    # O(N) per-step prep (coordinate add + 8 constant-offset rolls) is trivial
    # XLA work; the O(N^2) gather lives in the Pallas kernel above.
    for _ in range(time_step):
        g = grid2d + flow                                            # (3, N)
        rolled = jnp.concatenate(
            [jnp.roll(flow, -off, axis=1) for off in offsets], axis=0)  # (24, N)
        flow = flow + sample(g, rolled)

    return flow.reshape(1, 3, D, H, W)


def _reference(velocity, sample_grid, time_step=7):
    """Pure-JAX reference with PyTorch's exact math (gather via jnp.take)."""
    _, C, D, H, W = velocity.shape
    N = D * H * W
    flow = (velocity.astype(jnp.float32) / (2.0 ** time_step))[0].reshape(3, N)
    grid = jnp.transpose(sample_grid[0].reshape(N, 3).astype(jnp.float32), (1, 0))
    for _ in range(time_step):
        g = grid + flow
        nx = (g[0] - (W - 1) / 2.0) / (W - 1) * 2.0
        ny = (g[1] - (H - 1) / 2.0) / (H - 1) * 2.0
        nz = (g[2] - (D - 1) / 2.0) / (D - 1) * 2.0
        ix = (nx + 1.0) * 0.5 * (W - 1)
        iy = (ny + 1.0) * 0.5 * (H - 1)
        iz = (nz + 1.0) * 0.5 * (D - 1)
        ix0f, iy0f, iz0f = jnp.floor(ix), jnp.floor(iy), jnp.floor(iz)
        fx, fy, fz = ix - ix0f, iy - iy0f, iz - iz0f
        ix0, iy0, iz0 = (a.astype(jnp.int32) for a in (ix0f, iy0f, iz0f))
        sampled = jnp.zeros_like(flow)
        for dz in (0, 1):
            wz = fz if dz else 1.0 - fz
            zi = iz0 + dz
            for dy in (0, 1):
                wy = fy if dy else 1.0 - fy
                yi = iy0 + dy
                for dx in (0, 1):
                    wx = fx if dx else 1.0 - fx
                    xi = ix0 + dx
                    valid = ((xi >= 0) & (xi < W) & (yi >= 0) & (yi < H) &
                             (zi >= 0) & (zi < D))
                    w = jnp.where(valid, wz * wy * wx, 0.0)
                    flat = jnp.clip(zi * H * W + yi * W + xi, 0, N - 1)
                    sampled = sampled + w[None, :] * jnp.take(flow, flat, axis=1)
        flow = flow + sampled
    return flow.reshape(1, 3, D, H, W)


if __name__ == "__main__":
    key = jax.random.PRNGKey(0)
    D = H = W = 8
    time_step = 7

    velocity = jax.random.normal(key, (1, 3, D, H, W), jnp.float32) * 2.0
    # Canonical absolute-coordinate sample grid: channel 0 = x (W), 1 = y (H), 2 = z (D).
    zz, yy, xx = jnp.meshgrid(jnp.arange(D, dtype=jnp.float32),
                              jnp.arange(H, dtype=jnp.float32),
                              jnp.arange(W, dtype=jnp.float32), indexing="ij")
    sample_grid = jnp.stack([xx, yy, zz], axis=-1)[None]   # (1, D, H, W, 3)

    fn = jax.jit(diffeomorphic_transform, static_argnames=("time_step", "tile_n"))
    out = fn(velocity, sample_grid, time_step=time_step, tile_n=128)
    out = jax.block_until_ready(out)

    ref = _reference(velocity, sample_grid, time_step=time_step)
    assert out.shape == (1, 3, D, H, W)
    assert out.dtype == jnp.float32
    max_err = float(jnp.max(jnp.abs(out - ref)))
    # 2e-4: the kernel drops PyTorch's redundant normalize/un-normalize round
    # trip (identity up to last-ulp rounding); everything else is exact math.
    assert max_err < 2e-4, f"mismatch vs reference: {max_err}"
    print("KERNEL_OK")
</pallas_src>

<mosaic_0001>
module attributes {stable_mosaic.version = 11 : i64} {
  func.func @_gather_strip_kernel(%arg0: i32, %arg1: memref<3x128xf32, #tpu.memory_space<vmem>>, %arg2: memref<24x512xf32, #tpu.memory_space<vmem>>, %arg3: memref<3x128xf32, #tpu.memory_space<vmem>>) attributes {dimension_semantics = [#tpu.dimension_semantics<parallel>], iteration_bounds = array<i64: 4>, scalar_prefetch = 0 : i64, scratch_operands = 0 : i64, tpu.core_type = #tpu.core_type<tc>, window_params = [{transform_indices = @transform_0, window_bounds = array<i64: 3, 128>}, {pipeline_mode = #tpu.pipeline_mode<synchronous>, transform_indices = @transform_1, window_bounds = array<i64: 24, 512>}, {transform_indices = @transform_2, window_bounds = array<i64: 3, 128>}]} {
    %c0 = arith.constant 0 : index
    %c0_0 = arith.constant 0 : index
    %0 = vector.load %arg1[%c0, %c0_0] : memref<3x128xf32, #tpu.memory_space<vmem>>, vector<3x128xf32>
    %1 = vector.extract_strided_slice %0 {offsets = [0, 0], sizes = [1, 128], strides = [1, 1]} : vector<3x128xf32> to vector<1x128xf32>
    %2 = vector.extract_strided_slice %0 {offsets = [1, 0], sizes = [1, 128], strides = [1, 1]} : vector<3x128xf32> to vector<1x128xf32>
    %3 = vector.extract_strided_slice %0 {offsets = [2, 0], sizes = [1, 128], strides = [1, 1]} : vector<3x128xf32> to vector<1x128xf32>
    %4 = math.floor %1 : vector<1x128xf32>
    %cst = arith.constant 0.000000e+00 : f32
    %cst_1 = arith.constant 6.000000e+00 : f32
    %5 = vector.broadcast %cst : f32 to vector<1x128xf32>
    %6 = arith.maximumf %5, %4 : vector<1x128xf32>
    %7 = vector.broadcast %cst_1 : f32 to vector<1x128xf32>
    %8 = arith.minimumf %7, %6 : vector<1x128xf32>
    %9 = math.floor %2 : vector<1x128xf32>
    %cst_2 = arith.constant 0.000000e+00 : f32
    %cst_3 = arith.constant 6.000000e+00 : f32
    %10 = vector.broadcast %cst_2 : f32 to vector<1x128xf32>
    %11 = arith.maximumf %10, %9 : vector<1x128xf32>
    %12 = vector.broadcast %cst_3 : f32 to vector<1x128xf32>
    %13 = arith.minimumf %12, %11 : vector<1x128xf32>
    %14 = math.floor %3 : vector<1x128xf32>
    %cst_4 = arith.constant 0.000000e+00 : f32
    %cst_5 = arith.constant 6.000000e+00 : f32
    %15 = vector.broadcast %cst_4 : f32 to vector<1x128xf32>
    %16 = arith.maximumf %15, %14 : vector<1x128xf32>
    %17 = vector.broadcast %cst_5 : f32 to vector<1x128xf32>
    %18 = arith.minimumf %17, %16 : vector<1x128xf32>
    %19 = arith.subf %1, %8 : vector<1x128xf32>
    %20 = arith.subf %2, %13 : vector<1x128xf32>
    %21 = arith.subf %3, %18 : vector<1x128xf32>
    %22 = math.absf %19 : vector<1x128xf32>
    %cst_6 = arith.constant 1.000000e+00 : f32
    %23 = vector.broadcast %cst_6 : f32 to vector<1x128xf32>
    %24 = arith.subf %23, %22 : vector<1x128xf32>
    %cst_7 = arith.constant 0.000000e+00 : f32
    %25 = vector.broadcast %cst_7 : f32 to vector<1x128xf32>
    %26 = arith.maximumf %25, %24 : vector<1x128xf32>
    %cst_8 = arith.constant 1.000000e+00 : f32
    %27 = vector.broadcast %cst_8 : f32 to vector<1x128xf32>
    %28 = arith.subf %19, %27 : vector<1x128xf32>
    %29 = math.absf %28 : vector<1x128xf32>
    %cst_9 = arith.constant 1.000000e+00 : f32
    %30 = vector.broadcast %cst_9 : f32 to vector<1x128xf32>
    %31 = arith.subf %30, %29 : vector<1x128xf32>
    %cst_10 = arith.constant 0.000000e+00 : f32
    %32 = vector.broadcast %cst_10 : f32 to vector<1x128xf32>
    %33 = arith.maximumf %32, %31 : vector<1x128xf32>
    %34 = math.absf %20 : vector<1x128xf32>
    %cst_11 = arith.constant 1.000000e+00 : f32
    %35 = vector.broadcast %cst_11 : f32 to vector<1x128xf32>
    %36 = arith.subf %35, %34 : vector<1x128xf32>
    %cst_12 = arith.constant 0.000000e+00 : f32
    %37 = vector.broadcast %cst_12 : f32 to vector<1x128xf32>
    %38 = arith.maximumf %37, %36 : vector<1x128xf32>
    %cst_13 = arith.constant 1.000000e+00 : f32
    %39 = vector.broadcast %cst_13 : f32 to vector<1x128xf32>
    %40 = arith.subf %20, %39 : vector<1x128xf32>
    %41 = math.absf %40 : vector<1x128xf32>
    %cst_14 = arith.constant 1.000000e+00 : f32
    %42 = vector.broadcast %cst_14 : f32 to vector<1x128xf32>
    %43 = arith.subf %42, %41 : vector<1x128xf32>
    %cst_15 = arith.constant 0.000000e+00 : f32
    %44 = vector.broadcast %cst_15 : f32 to vector<1x128xf32>
    %45 = arith.maximumf %44, %43 : vector<1x128xf32>
    %46 = math.absf %21 : vector<1x128xf32>
    %cst_16 = arith.constant 1.000000e+00 : f32
    %47 = vector.broadcast %cst_16 : f32 to vector<1x128xf32>
    %48 = arith.subf %47, %46 : vector<1x128xf32>
    %cst_17 = arith.constant 0.000000e+00 : f32
    %49 = vector.broadcast %cst_17 : f32 to vector<1x128xf32>
    %50 = arith.maximumf %49, %48 : vector<1x128xf32>
    %cst_18 = arith.constant 1.000000e+00 : f32
    %51 = vector.broadcast %cst_18 : f32 to vector<1x128xf32>
    %52 = arith.subf %21, %51 : vector<1x128xf32>
    %53 = math.absf %52 : vector<1x128xf32>
    %cst_19 = arith.constant 1.000000e+00 : f32
    %54 = vector.broadcast %cst_19 : f32 to vector<1x128xf32>
    %55 = arith.subf %54, %53 : vector<1x128xf32>
    %cst_20 = arith.constant 0.000000e+00 : f32
    %56 = vector.broadcast %cst_20 : f32 to vector<1x128xf32>
    %57 = arith.maximumf %56, %55 : vector<1x128xf32>
    %58 = arith.fptosi %18 : vector<1x128xf32> to vector<1x128xi32>
    %c64_i32 = arith.constant 64 : i32
    %59 = vector.broadcast %c64_i32 : i32 to vector<1x128xi32>
    %60 = arith.muli %58, %59 : vector<1x128xi32>
    %61 = arith.fptosi %13 : vector<1x128xf32> to vector<1x128xi32>
    %c8_i32 = arith.constant 8 : i32
    %62 = vector.broadcast %c8_i32 : i32 to vector<1x128xi32>
    %63 = arith.muli %61, %62 : vector<1x128xi32>
    %64 = arith.addi %60, %63 : vector<1x128xi32>
    %65 = arith.fptosi %8 : vector<1x128xf32> to vector<1x128xi32>
    %66 = arith.addi %64, %65 : vector<1x128xi32>
    %67 = tpu.iota {dimensions = array<i32: 0>} : vector<512x128xi32>
    %68 = vector.broadcast %66 : vector<1x128xi32> to vector<512x128xi32>
    %69 = arith.cmpi eq, %67, %68 : vector<512x128xi32>
    %cst_21 = arith.constant 1.000000e+00 : f32
    %cst_22 = arith.constant 0.000000e+00 : f32
    %70 = vector.broadcast %cst_21 : f32 to vector<512x128xf32>
    %71 = vector.broadcast %cst_22 : f32 to vector<512x128xf32>
    %72 = arith.select %69, %70, %71 : vector<512x128xi1>, vector<512x128xf32>
    %c0_23 = arith.constant 0 : index
    %c0_24 = arith.constant 0 : index
    %73 = vector.load %arg2[%c0_23, %c0_24] : memref<24x512xf32, #tpu.memory_space<vmem>>, vector<24x512xf32>
    %cst_25 = arith.constant dense<0.000000e+00> : vector<24x128xf32>
    %74 = tpu.matmul %73, %72, %cst_25 {dimension_numbers = #tpu.dot_dimension_numbers<[1], [0], [0], [1], [0, 0, 1, 1], [], []>} : vector<24x512xf32>, vector<512x128xf32>, vector<24x128xf32> -> vector<24x128xf32>
    %75 = arith.mulf %50, %38 : vector<1x128xf32>
    %76 = arith.mulf %75, %26 : vector<1x128xf32>
    %77 = vector.extract_strided_slice %74 {offsets = [0, 0], sizes = [3, 128], strides = [1, 1]} : vector<24x128xf32> to vector<3x128xf32>
    %78 = vector.broadcast %76 : vector<1x128xf32> to vector<3x128xf32>
    %79 = arith.mulf %78, %77 : vector<3x128xf32>
    %80 = arith.mulf %50, %38 : vector<1x128xf32>
    %81 = arith.mulf %80, %33 : vector<1x128xf32>
    %82 = vector.extract_strided_slice %74 {offsets = [3, 0], sizes = [3, 128], strides = [1, 1]} : vector<24x128xf32> to vector<3x128xf32>
    %83 = vector.broadcast %81 : vector<1x128xf32> to vector<3x128xf32>
    %84 = arith.mulf %83, %82 : vector<3x128xf32>
    %85 = arith.addf %79, %84 : vector<3x128xf32>
    %86 = arith.mulf %50, %45 : vector<1x128xf32>
    %87 = arith.mulf %86, %26 : vector<1x128xf32>
    %88 = vector.extract_strided_slice %74 {offsets = [6, 0], sizes = [3, 128], strides = [1, 1]} : vector<24x128xf32> to vector<3x128xf32>
    %89 = vector.broadcast %87 : vector<1x128xf32> to vector<3x128xf32>
    %90 = arith.mulf %89, %88 : vector<3x128xf32>
    %91 = arith.addf %85, %90 : vector<3x128xf32>
    %92 = arith.mulf %50, %45 : vector<1x128xf32>
    %93 = arith.mulf %92, %33 : vector<1x128xf32>
    %94 = vector.extract_strided_slice %74 {offsets = [9, 0], sizes = [3, 128], strides = [1, 1]} : vector<24x128xf32> to vector<3x128xf32>
    %95 = vector.broadcast %93 : vector<1x128xf32> to vector<3x128xf32>
    %96 = arith.mulf %95, %94 : vector<3x128xf32>
    %97 = arith.addf %91, %96 : vector<3x128xf32>
    %98 = arith.mulf %57, %38 : vector<1x128xf32>
    %99 = arith.mulf %98, %26 : vector<1x128xf32>
    %100 = vector.extract_strided_slice %74 {offsets = [12, 0], sizes = [3, 128], strides = [1, 1]} : vector<24x128xf32> to vector<3x128xf32>
    %101 = vector.broadcast %99 : vector<1x128xf32> to vector<3x128xf32>
    %102 = arith.mulf %101, %100 : vector<3x128xf32>
    %103 = arith.addf %97, %102 : vector<3x128xf32>
    %104 = arith.mulf %57, %38 : vector<1x128xf32>
    %105 = arith.mulf %104, %33 : vector<1x128xf32>
    %106 = vector.extract_strided_slice %74 {offsets = [15, 0], sizes = [3, 128], strides = [1, 1]} : vector<24x128xf32> to vector<3x128xf32>
    %107 = vector.broadcast %105 : vector<1x128xf32> to vector<3x128xf32>
    %108 = arith.mulf %107, %106 : vector<3x128xf32>
    %109 = arith.addf %103, %108 : vector<3x128xf32>
    %110 = arith.mulf %57, %45 : vector<1x128xf32>
    %111 = arith.mulf %110, %26 : vector<1x128xf32>
    %112 = vector.extract_strided_slice %74 {offsets = [18, 0], sizes = [3, 128], strides = [1, 1]} : vector<24x128xf32> to vector<3x128xf32>
    %113 = vector.broadcast %111 : vector<1x128xf32> to vector<3x128xf32>
    %114 = arith.mulf %113, %112 : vector<3x128xf32>
    %115 = arith.addf %109, %114 : vector<3x128xf32>
    %116 = arith.mulf %57, %45 : vector<1x128xf32>
    %117 = arith.mulf %116, %33 : vector<1x128xf32>
    %118 = vector.extract_strided_slice %74 {offsets = [21, 0], sizes = [3, 128], strides = [1, 1]} : vector<24x128xf32> to vector<3x128xf32>
    %119 = vector.broadcast %117 : vector<1x128xf32> to vector<3x128xf32>
    %120 = arith.mulf %119, %118 : vector<3x128xf32>
    %121 = arith.addf %115, %120 : vector<3x128xf32>
    %c0_26 = arith.constant 0 : index
    %c0_27 = arith.constant 0 : index
    %122 = vector.load %arg3[%c0_26, %c0_27] : memref<3x128xf32, #tpu.memory_space<vmem>>, vector<3x128xf32>
    tpu.vector_store %arg3[%c0_26, %c0_27], %121 {strides = array<i32>} : memref<3x128xf32, #tpu.memory_space<vmem>>, vector<3x128xf32>,
    return
  }
  func.func @transform_0(%arg0: i32) -> (i32, i32) {
    %c0_i32 = arith.constant 0 : i32
    %c0_i32_0 = arith.constant 0 : i32
    return %c0_i32, %arg0 : i32, i32
  }
  func.func @transform_1(%arg0: i32) -> (i32, i32) {
    %c0_i32 = arith.constant 0 : i32
    %c0_i32_0 = arith.constant 0 : i32
    %c0_i32_1 = arith.constant 0 : i32
    return %c0_i32, %c0_i32_0 : i32, i32
  }
  func.func @transform_2(%arg0: i32) -> (i32, i32) {
    %c0_i32 = arith.constant 0 : i32
    %c0_i32_0 = arith.constant 0 : i32
    return %c0_i32, %arg0 : i32, i32
  }
}

</mosaic_0001>

<llo_original>
// kernel: squeeze.1
$region0: #{squeeze.1}
  %s0 = inlined_call_operand.vmem [shape: f32[1,8,8,8,3], index: 0, kind: input, shape index: {}]
  %s1 = inlined_call_operand.vmem [shape: f32[512,3], index: 1, kind: output, shape index: {}]
  $region1: #{squeeze.1} parent=0
    #allocation0 [shape = 'u8[16384]{0}', space=vmem, size = 0x4000, scoped, tag = 'scoped mem for output reshape']
    %s2 = smov 3
    %v3 = vld [vmem:[%s0] ss:$16 sm:%s2]
    %s4 = smov 12
    %v5 = vld [vmem:[%s0] ss:$16 sm:%s4]
    %vm6 = vcmask 1043458
    %v7 = vsel %vm6, %v5, %v3
    %s8 = smov 48
    %v9 = vld [vmem:[%s0] ss:$16 sm:%s8]
    %vm10 = vcmask 1045508
    %v11 = vsel %vm10, %v9, %v7
    %s12 = smov 192
    %v13 = vld [vmem:[%s0] ss:$16 sm:%s12]
    %vm14 = vcmask 1047558
    %v15 = vsel %vm14, %v13, %v11
    %vm16 = vcmask 64512
    %17 = vst.msk [vmem:[#allocation0] ss:$8 sm:$0xf] %vm16, %v15
    %s18 = scalar_lea.vmem [#allocation0], 4294967265
    %19 = vst.msk [vmem:[%s18] ss:$8 sm:$0xf0] %vm16, %v15
    %s20 = scalar_lea.vmem %s0, 128
    %s21 = smov 3
    %v22 = vld [vmem:[%s20] ss:$16 sm:%s21]
    %s23 = scalar_lea.vmem %s0, 128
    %s24 = smov 12
    %v25 = vld [vmem:[%s23] ss:$16 sm:%s24]
    %vm26 = vcmask 1043458
    %v27 = vsel %vm26, %v25, %v22
    %vm28 = vcmask 64512
    %s29 = scalar_lea.vmem [#allocation0], 2
    %30 = vst.msk [vmem:[%s29] ss:$8 sm:$0xf] %vm28, %v27
    %s31 = scalar_lea.vmem %s0, 15
    %v32 = vld [vmem:[%s31] sm:$0x1]
    %s33 = scalar_lea.vmem %s0, 78
    %v34 = vld [vmem:[%s33] sm:$0x2]
    %vm35 = vcmask 1041409
    %v36 = vsel %vm35, %v34, %v32
    %s37 = scalar_lea.vmem %s0, 367
    %s38 = smov 12
    %v39 = vld [vmem:[%s37] ss:$-112 sm:%s38]
    %vm40 = vcmask 1043458
    %v41 = vsel %vm40, %v39, %v36
    %s42 = scalar_lea.vmem %s0, 91
    %v43 = vld [vmem:[%s42] sm:$0x10]
    %vm44 = vcmask 1044484
    %v45 = vsel %vm44, %v43, %v41
    %s46 = scalar_lea.vmem %s0, 719
    %s47 = smov 96
    %v48 = vld [vmem:[%s46] ss:$-112 sm:%s47]
    %vm49 = vcmask 1046533
    %v50 = vsel %vm49, %v48, %v45
    %s51 = scalar_lea.vmem %s0, 104
    %v52 = vld [vmem:[%s51] sm:$0x80]
    %vm53 = vcmask 1047559
    %v54 = vsel %vm53, %v52, %v50
    %55 = vrot.lane.b32.xlu0 %v54, 120
    %v56 = vpop.permute.xlu0 %55
    %vm57 = vcmask 1048512
    %58 = vst.msk [vmem:[#allocation0] sm:$0x7] %vm57, %v56
    %s59 = scalar_lea.vmem [#allocation0], 5
    %60 = vst.msk [vmem:[%s59] sm:$0x38] %vm57, %v56
    %s61 = scalar_lea.vmem [#allocation0], 10
    %62 = vst.msk [vmem:[%s61] sm:$0xc0] %vm57, %v56
    %s63 = scalar_lea.vmem %s0, 175
    %s64 = smov 3
    %v65 = vld [vmem:[%s63] ss:$-112 sm:%s64]
    %s66 = scalar_lea.vmem %s0, 125
    %v67 = vld [vmem:[%s66] sm:$0x4]
    %vm68 = vcmask 1042434
    %v69 = vsel %vm68, %v67, %v65
    %s70 = scalar_lea.vmem %s0, 188
    %v71 = vld [vmem:[%s70] sm:$0x8]
    %vm72 = vcmask 1043459
    %v73 = vsel %vm72, %v71, %v69
    %74 = vrot.lane.b32.xlu0 %v73, 120
    %v75 = vpop.permute.xlu0 %74
    %vm76 = vcmask 1048512
    %s77 = scalar_lea.vmem [#allocation0], 18
    %78 = vst.msk [vmem:[%s77] ss:$6 sm:$0x3] %vm76, %v75
    %s79 = scalar_lea.vmem [#allocation0], 23
    %80 = vst.msk [vmem:[%s79] sm:$0xc] %vm76, %v75
    %s81 = scalar_lea.vmem %s0, 14
    %v82 = vld [vmem:[%s81] sm:$0x1]
    %s83 = scalar_lea.vmem %s0, 77
    %v84 = vld [vmem:[%s83] sm:$0x2]
    %vm85 = vcmask 1041409
    %v86 = vsel %vm85, %v84, %v82
    %s87 = scalar_lea.vmem %s0, 366
    %s88 = smov 12
    %v89 = vld [vmem:[%s87] ss:$-112 sm:%s88]
    %vm90 = vcmask 1043458
    %v91 = vsel %vm90, %v89, %v86
    %s92 = scalar_lea.vmem %s0, 90
    %v93 = vld [vmem:[%s92] sm:$0x10]
    %vm94 = vcmask 1044484
    %v95 = vsel %vm94, %v93, %v91
    %s96 = scalar_lea.vmem %s0, 718
    %s97 = smov 96
    %v98 = vld [vmem:[%s96] ss:$-112 sm:%s97]
    %vm99 = vcmask 1046533
    %v100 = vsel %vm99, %v98, %v95
    %s101 = scalar_lea.vmem %s0, 103
    %v102 = vld [vmem:[%s101] sm:$0x80]
    %vm103 = vcmask 1047559
    %v104 = vsel %vm103, %v102, %v100
    %105 = vrot.lane.b32.xlu0 %v104, 112
    %v106 = vpop.permute.xlu0 %105
    %vm107 = vcmask 982912
    %108 = vst.msk [vmem:[#allocation0] sm:$0x7] %vm107, %v106
    %s109 = scalar_lea.vmem [#allocation0], 5
    %110 = vst.msk [vmem:[%s109] sm:$0x38] %vm107, %v106
    %s111 = scalar_lea.vmem [#allocation0], 10
    %112 = vst.msk [vmem:[%s111] sm:$0xc0] %vm107, %v106
    %s113 = scalar_lea.vmem %s0, 174
    %s114 = smov 3
    %v115 = vld [vmem:[%s113] ss:$-112 sm:%s114]
    %s116 = scalar_lea.vmem %s0, 124
    %v117 = vld [vmem:[%s116] sm:$0x4]
    %vm118 = vcmask 1042434
    %v119 = vsel %vm118, %v117, %v115
    %s120 = scalar_lea.vmem %s0, 187
    %v121 = vld [vmem:[%s120] sm:$0x8]
    %vm122 = vcmask 1043459
    %v123 = vsel %vm122, %v121, %v119
    %124 = vrot.lane.b32.xlu0 %v123, 112
    %v125 = vpop.permute.xlu0 %124
    %vm126 = vcmask 982912
    %s127 = scalar_lea.vmem [#allocation0], 18
    %128 = vst.msk [vmem:[%s127] ss:$6 sm:$0x3] %vm126, %v125
    %s129 = scalar_lea.vmem [#allocation0], 23
    %130 = vst.msk [vmem:[%s129] sm:$0xc] %vm126, %v125
    %s131 = scalar_lea.vmem %s0, 13
    %v132 = vld [vmem:[%s131] sm:$0x1]
    %s133 = scalar_lea.vmem %s0, 76
    %v134 = vld [vmem:[%s133] sm:$0x2]
    %vm135 = vcmask 1041409
    %v136 = vsel %vm135, %v134, %v132
    %s137 = scalar_lea.vmem %s0, 365
    %s138 = smov 12
    %v139 = vld [vmem:[%s137] ss:$-112 sm:%s138]
    %vm140 = vcmask 1043458
    %v141 = vsel %vm140, %v139, %v136
    %s142 = scalar_lea.vmem %s0, 89
    %v143 = vld [vmem:[%s142] sm:$0x10]
    %vm144 = vcmask 1044484
    %v145 = vsel %vm144, %v143, %v141
    %s146 = scalar_lea.vmem %s0, 717
    %s147 = smov 96
    %v148 = vld [vmem:[%s146] ss:$-112 sm:%s147]
    %vm149 = vcmask 1046533
    %v150 = vsel %vm149, %v148, %v145
    %s151 = scalar_lea.vmem %s0, 102
    %v152 = vld [vmem:[%s151] sm:$0x80]
    %vm153 = vcmask 1047559
    %v154 = vsel %vm153, %v152, %v150
    %155 = vrot.lane.b32.xlu0 %v154, 104
    %v156 = vpop.permute.xlu0 %155
    %vm157 = vcmask 917312
    %158 = vst.msk [vmem:[#allocation0] sm:$0x7] %vm157, %v156
    %s159 = scalar_lea.vmem [#allocation0], 5
    %160 = vst.msk [vmem:[%s159] sm:$0x38] %vm157, %v156
    %s161 = scalar_lea.vmem [#allocation0], 10
    %162 = vst.msk [vmem:[%s161] sm:$0xc0] %vm157, %v156
    %s163 = scalar_lea.vmem %s0, 173
    %s164 = smov 3
    %v165 = vld [vmem:[%s163] ss:$-112 sm:%s164]
    %s166 = scalar_lea.vmem %s0, 123
    %v167 = vld [vmem:[%s166] sm:$0x4]
    %vm168 = vcmask 1042434
    %v169 = vsel %vm168, %v167, %v165
    %s170 = scalar_lea.vmem %s0, 186
    %v171 = vld [vmem:[%s170] sm:$0x8]
    %vm172 = vcmask 1043459
    %v173 = vsel %vm172, %v171, %v169
    %174 = vrot.lane.b32.xlu0 %v173, 104
    %v175 = vpop.permute.xlu0 %174
    %vm176 = vcmask 917312
    %s177 = scalar_lea.vmem [#allocation0], 18
    %178 = vst.msk [vmem:[%s177] ss:$6 sm:$0x3] %vm176, %v175
    %s179 = scalar_lea.vmem [#allocation0], 23
    %180 = vst.msk [vmem:[%s179] sm:$0xc] %vm176, %v175
    %s181 = scalar_lea.vmem %s0, 12
    %v182 = vld [vmem:[%s181] sm:$0x1]
    %s183 = scalar_lea.vmem %s0, 75
    %v184 = vld [vmem:[%s183] sm:$0x2]
    %vm185 = vcmask 1041409
    %v186 = vsel %vm185, %v184, %v182
    %s187 = scalar_lea.vmem %s0, 364
    %s188 = smov 12
    %v189 = vld [vmem:[%s187] ss:$-112 sm:%s188]
    %vm190 = vcmask 1043458
    %v191 = vsel %vm190, %v189, %v186
    %s192 = scalar_lea.vmem %s0, 88
    %v193 = vld [vmem:[%s192] sm:$0x10]
    %vm194 = vcmask 1044484
    %v195 = vsel %vm194, %v193, %v191
    %s196 = scalar_lea.vmem %s0, 716
    %s197 = smov 96
    %v198 = vld [vmem:[%s196] ss:$-112 sm:%s197]
    %vm199 = vcmask 1046533
    %v200 = vsel %vm199, %v198, %v195
    %s201 = scalar_lea.vmem %s0, 101
    %v202 = vld [vmem:[%s201] sm:$0x80]
    %vm203 = vcmask 1047559
    %v204 = vsel %vm203, %v202, %v200
    %205 = vrot.lane.b32.xlu0 %v204, 96
    %v206 = vpop.permute.xlu0 %205
    %vm207 = vcmask 851712
    %208 = vst.msk [vmem:[#allocation0] sm:$0x7] %vm207, %v206
    %s209 = scalar_lea.vmem [#allocation0], 5
    %210 = vst.msk [vmem:[%s209] sm:$0x38] %vm207, %v206
    %s211 = scalar_lea.vmem [#allocation0], 10
    %212 = vst.msk [vmem:[%s211] sm:$0xc0] %vm207, %v206
    %s213 = scalar_lea.vmem %s0, 172
    %s214 = smov 3
    %v215 = vld [vmem:[%s213] ss:$-112 sm:%s214]
    %s216 = scalar_lea.vmem %s0, 122
    %v217 = vld [vmem:[%s216] sm:$0x4]
    %vm218 = vcmask 1042434
    %v219 = vsel %vm218, %v217, %v215
    %s220 = scalar_lea.vmem %s0, 185
    %v221 = vld [vmem:[%s220] sm:$0x8]
    %vm222 = vcmask 1043459
    %v223 = vsel %vm222, %v221, %v219
    %224 = vrot.lane.b32.xlu0 %v223, 96
    %v225 = vpop.permute.xlu0 %224
    %vm226 = vcmask 851712
    %s227 = scalar_lea.vmem [#allocation0], 18
    %228 = vst.msk [vmem:[%s227] ss:$6 sm:$0x3] %vm226, %v225
    %s229 = scalar_lea.vmem [#allocation0], 23
    %230 = vst.msk [vmem:[%s229] sm:$0xc] %vm226, %v225
    %s231 = scalar_lea.vmem %s0, 11
    %v232 = vld [vmem:[%s231] sm:$0x1]
    %s233 = scalar_lea.vmem %s0, 74
    %v234 = vld [vmem:[%s233] sm:$0x2]
    %vm235 = vcmask 1041409
    %v236 = vsel %vm235, %v234, %v232
    %s237 = scalar_lea.vmem %s0, 363
    %s238 = smov 12
    %v239 = vld [vmem:[%s237] ss:$-112 sm:%s238]
    %vm240 = vcmask 1043458
    %v241 = vsel %vm240, %v239, %v236
    %s242 = scalar_lea.vmem %s0, 87
    %v243 = vld [vmem:[%s242] sm:$0x10]
    %vm244 = vcmask 1044484
    %v245 = vsel %vm244, %v243, %v241
    %s246 = scalar_lea.vmem %s0, 715
    %s247 = smov 96
    %v248 = vld [vmem:[%s246] ss:$-112 sm:%s247]
    %vm249 = vcmask 1046533
    %v250 = vsel %vm249, %v248, %v245
    %s251 = scalar_lea.vmem %s0, 100
    %v252 = vld [vmem:[%s251] sm:$0x80]
    %vm253 = vcmask 1047559
    %v254 = vsel %vm253, %v252, %v250
    %255 = vrot.lane.b32.xlu0 %v254, 88
    %v256 = vpop.permute.xlu0 %255
    %vm257 = vcmask 786112
    %258 = vst.msk [vmem:[#allocation0] sm:$0x7] %vm257, %v256
    %s259 = scalar_lea.vmem [#allocation0], 5
    %260 = vst.msk [vmem:[%s259] sm:$0x38] %vm257, %v256
    %s261 = scalar_lea.vmem [#allocation0], 10
    %262 = vst.msk [vmem:[%s261] sm:$0xc0] %vm257, %v256
    %s263 = scalar_lea.vmem %s0, 171
    %s264 = smov 3
    %v265 = vld [vmem:[%s263] ss:$-112 sm:%s264]
    %s266 = scalar_lea.vmem %s0, 121
    %v267 = vld [vmem:[%s266] sm:$0x4]
    %vm268 = vcmask 1042434
    %v269 = vsel %vm268, %v267, %v265
    %s270 = scalar_lea.vmem %s0, 184
    %v271 = vld [vmem:[%s270] sm:$0x8]
    %vm272 = vcmask 1043459
    %v273 = vsel %vm272, %v271, %v269
    %274 = vrot.lane.b32.xlu0 %v273, 88
    %v275 = vpop.permute.xlu0 %274
    %vm276 = vcmask 786112
    %s277 = scalar_lea.vmem [#allocation0], 18
    %278 = vst.msk [vmem:[%s277] ss:$6 sm:$0x3] %vm276, %v275
    %s279 = scalar_lea.vmem [#allocation0], 23
    %280 = vst.msk [vmem:[%s279] sm:$0xc] %vm276, %v275
    %s281 = scalar_lea.vmem %s0, 10
    %v282 = vld [vmem:[%s281] sm:$0x1]
    %s283 = scalar_lea.vmem %s0, 73
    %v284 = vld [vmem:[%s283] sm:$0x2]
    %vm285 = vcmask 1041409
    %v286 = vsel %vm285, %v284, %v282
    %s287 = scalar_lea.vmem %s0, 362
    %s288 = smov 12
    %v289 = vld [vmem:[%s287] ss:$-112 sm:%s288]
    %vm290 = vcmask 1043458
    %v291 = vsel %vm290, %v289, %v286
    %s292 = scalar_lea.vmem %s0, 86
    %v293 = vld [vmem:[%s292] sm:$0x10]
    %vm294 = vcmask 1044484
    %v295 = vsel %vm294, %v293, %v291
    %s296 = scalar_lea.vmem %s0, 714
    %s297 = smov 96
    %v298 = vld [vmem:[%s296] ss:$-112 sm:%s297]
    %vm299 = vcmask 1046533
    %v300 = vsel %vm299, %v298, %v295
    %s301 = scalar_lea.vmem %s0, 99
    %v302 = vld [vmem:[%s301] sm:$0x80]
    %vm303 = vcmask 1047559
    %v304 = vsel %vm303, %v302, %v300
    %305 = vrot.lane.b32.xlu0 %v304, 80
    %v306 = vpop.permute.xlu0 %305
    %vm307 = vcmask 720512
    %308 = vst.msk [vmem:[#allocation0] sm:$0x7] %vm307, %v306
    %s309 = scalar_lea.vmem [#allocation0], 5
    %310 = vst.msk [vmem:[%s309] sm:$0x38] %vm307, %v306
    %s311 = scalar_lea.vmem [#allocation0], 10
    %312 = vst.msk [vmem:[%s311] sm:$0xc0] %vm307, %v306
    %s313 = scalar_lea.vmem %s0, 170
    %s314 = smov 3
    %v315 = vld [vmem:[%s313] ss:$-112 sm:%s314]
    %s316 = scalar_lea.vmem %s0, 120
    %v317 = vld [vmem:[%s316] sm:$0x4]
    %vm318 = vcmask 1042434
    %v319 = vsel %vm318, %v317, %v315
    %s320 = scalar_lea.vmem %s0, 183
    %v321 = vld [vmem:[%s320] sm:$0x8]
    %vm322 = vcmask 1043459
    %v323 = vsel %vm322, %v321, %v319
    %324 = vrot.lane.b32.xlu0 %v323, 80
    %v325 = vpop.permute.xlu0 %324
    %vm326 = vcmask 720512
    %s327 = scalar_lea.vmem [#allocation0], 18
    %328 = vst.msk [vmem:[%s327] ss:$6 sm:$0x3] %vm326, %v325
    %s329 = scalar_lea.vmem [#allocation0], 23
    %330 = vst.msk [vmem:[%s329] sm:$0xc] %vm326, %v325
    %s331 = scalar_lea.vmem %s0, 9
    %v332 = vld [vmem:[%s331] sm:$0x1]
    %s333 = scalar_lea.vmem %s0, 72
    %v334 = vld [vmem:[%s333] sm:$0x2]
    %vm335 = vcmask 1041409
    %v336 = vsel %vm335, %v334, %v332
    %s337 = scalar_lea.vmem %s0, 361
    %s338 = smov 12
    %v339 = vld [vmem:[%s337] ss:$-112 sm:%s338]
    %vm340 = vcmask 1043458
    %v341 = vsel %vm340, %v339, %v336
    %s342 = scalar_lea.vmem %s0, 85
    %v343 = vld [vmem:[%s342] sm:$0x10]
    %vm344 = vcmask 1044484
    %v345 = vsel %vm344, %v343, %v341
    %s346 = scalar_lea.vmem %s0, 713
    %s347 = smov 96
    %v348 = vld [vmem:[%s346] ss:$-112 sm:%s347]
    %vm349 = vcmask 1046533
    %v350 = vsel %vm349, %v348, %v345
    %s351 = scalar_lea.vmem %s0, 98
    %v352 = vld [vmem:[%s351] sm:$0x80]
    %vm353 = vcmask 1047559
    %v354 = vsel %vm353, %v352, %v350
    %355 = vrot.lane.b32.xlu0 %v354, 72
    %v356 = vpop.permute.xlu0 %355
    %vm357 = vcmask 654912
    %358 = vst.msk [vmem:[#allocation0] sm:$0x7] %vm357, %v356
    %s359 = scalar_lea.vmem [#allocation0], 5
    %360 = vst.msk [vmem:[%s359] sm:$0x38] %vm357, %v356
    %s361 = scalar_lea.vmem [#allocation0], 10
    %362 = vst.msk [vmem:[%s361] sm:$0xc0] %vm357, %v356
    %s363 = scalar_lea.vmem %s0, 169
    %s364 = smov 3
    %v365 = vld [vmem:[%s363] ss:$-112 sm:%s364]
    %s366 = scalar_lea.vmem %s0, 119
    %v367 = vld [vmem:[%s366] sm:$0x4]
    %vm368 = vcmask 1042434
    %v369 = vsel %vm368, %v367, %v365
    %s370 = scalar_lea.vmem %s0, 182
    %v371 = vld [vmem:[%s370] sm:$0x8]
    %vm372 = vcmask 1043459
    %v373 = vsel %vm372, %v371, %v369
    %374 = vrot.lane.b32.xlu0 %v373, 72
    %v375 = vpop.permute.xlu0 %374
    %vm376 = vcmask 654912
    %s377 = scalar_lea.vmem [#allocation0], 18
    %378 = vst.msk [vmem:[%s377] ss:$6 sm:$0x3] %vm376, %v375
    %s379 = scalar_lea.vmem [#allocation0], 23
    %380 = vst.msk [vmem:[%s379] sm:$0xc] %vm376, %v375
    %s381 = scalar_lea.vmem %s0, 8
    %v382 = vld [vmem:[%s381] sm:$0x1]
    %s383 = scalar_lea.vmem %s0, 71
    %v384 = vld [vmem:[%s383] sm:$0x2]
    %vm385 = vcmask 1041409
    %v386 = vsel %vm385, %v384, %v382
    %s387 = scalar_lea.vmem %s0, 360
    %s388 = smov 12
    %v389 = vld [vmem:[%s387] ss:$-112 sm:%s388]
    %vm390 = vcmask 1043458
    %v391 = vsel %vm390, %v389, %v386
    %s392 = scalar_lea.vmem %s0, 84
    %v393 = vld [vmem:[%s392] sm:$0x10]
    %vm394 = vcmask 1044484
    %v395 = vsel %vm394, %v393, %v391
    %s396 = scalar_lea.vmem %s0, 712
    %s397 = smov 96
    %v398 = vld [vmem:[%s396] ss:$-112 sm:%s397]
    %vm399 = vcmask 1046533
    %v400 = vsel %vm399, %v398, %v395
    %s401 = scalar_lea.vmem %s0, 97
    %v402 = vld [vmem:[%s401] sm:$0x80]
    %vm403 = vcmask 1047559
    %v404 = vsel %vm403, %v402, %v400
    %405 = vrot.lane.b32.xlu0 %v404, 64
    %v406 = vpop.permute.xlu0 %405
    %vm407 = vcmask 589312
    %408 = vst.msk [vmem:[#allocation0] sm:$0x7] %vm407, %v406
    %s409 = scalar_lea.vmem [#allocation0], 5
    %410 = vst.msk [vmem:[%s409] sm:$0x38] %vm407, %v406
    %s411 = scalar_lea.vmem [#allocation0], 10
    %412 = vst.msk [vmem:[%s411] sm:$0xc0] %vm407, %v406
    %s413 = scalar_lea.vmem %s0, 168
    %s414 = smov 3
    %v415 = vld [vmem:[%s413] ss:$-112 sm:%s414]
    %s416 = scalar_lea.vmem %s0, 118
    %v417 = vld [vmem:[%s416] sm:$0x4]
    %vm418 = vcmask 1042434
    %v419 = vsel %vm418, %v417, %v415
    %s420 = scalar_lea.vmem %s0, 181
    %v421 = vld [vmem:[%s420] sm:$0x8]
    %vm422 = vcmask 1043459
    %v423 = vsel %vm422, %v421, %v419
    %424 = vrot.lane.b32.xlu0 %v423, 64
    %v425 = vpop.permute.xlu0 %424
    %vm426 = vcmask 589312
    %s427 = scalar_lea.vmem [#allocation0], 18
    %428 = vst.msk [vmem:[%s427] ss:$6 sm:$0x3] %vm426, %v425
    %s429 = scalar_lea.vmem [#allocation0], 23
    %430 = vst.msk [vmem:[%s429] sm:$0xc] %vm426, %v425
    %s431 = scalar_lea.vmem %s0, 7
    %v432 = vld [vmem:[%s431] sm:$0x1]
    %s433 = scalar_lea.vmem %s0, 70
    %v434 = vld [vmem:[%s433] sm:$0x2]
    %vm435 = vcmask 1041409
    %v436 = vsel %vm435, %v434, %v432
    %s437 = scalar_lea.vmem %s0, 359
    %s438 = smov 12
    %v439 = vld [vmem:[%s437] ss:$-112 sm:%s438]
    %vm440 = vcmask 1043458
    %v441 = vsel %vm440, %v439, %v436
    %s442 = scalar_lea.vmem %s0, 83
    %v443 = vld [vmem:[%s442] sm:$0x10]
    %vm444 = vcmask 1044484
    %v445 = vsel %vm444, %v443, %v441
    %s446 = scalar_lea.vmem %s0, 711
    %s447 = smov 96
    %v448 = vld [vmem:[%s446] ss:$-112 sm:%s447]
    %vm449 = vcmask 1046533
    %v450 = vsel %vm449, %v448, %v445
    %s451 = scalar_lea.vmem %s0, 96
    %v452 = vld [vmem:[%s451] sm:$0x80]
    %vm453 = vcmask 1047559
    %v454 = vsel %vm453, %v452, %v450
    %455 = vrot.lane.b32.xlu0 %v454, 56
    %v456 = vpop.permute.xlu0 %455
    %vm457 = vcmask 523712
    %458 = vst.msk [vmem:[#allocation0] sm:$0x7] %vm457, %v456
    %s459 = scalar_lea.vmem [#allocation0], 5
    %460 = vst.msk [vmem:[%s459] sm:$0x38] %vm457, %v456
    %s461 = scalar_lea.vmem [#allocation0], 10
    %462 = vst.msk [vmem:[%s461] sm:$0xc0] %vm457, %v456
    %s463 = scalar_lea.vmem %s0, 167
    %s464 = smov 3
    %v465 = vld [vmem:[%s463] ss:$-112 sm:%s464]
    %s466 = scalar_lea.vmem %s0, 117
    %v467 = vld [vmem:[%s466] sm:$0x4]
    %vm468 = vcmask 1042434
    %v469 = vsel %vm468, %v467, %v465
    %s470 = scalar_lea.vmem %s0, 180
    %v471 = vld [vmem:[%s470] sm:$0x8]
    %vm472 = vcmask 1043459
    %v473 = vsel %vm472, %v471, %v469
    %474 = vrot.lane.b32.xlu0 %v473, 56
    %v475 = vpop.permute.xlu0 %474
    %vm476 = vcmask 523712
    %s477 = scalar_lea.vmem [#allocation0], 18
    %478 = vst.msk [vmem:[%s477] ss:$6 sm:$0x3] %vm476, %v475
    %s479 = scalar_lea.vmem [#allocation0], 23
    %480 = vst.msk [vmem:[%s479] sm:$0xc] %vm476, %v475
    %s481 = scalar_lea.vmem %s0, 6
    %v482 = vld [vmem:[%s481] sm:$0x1]
    %s483 = scalar_lea.vmem %s0, 69
    %v484 = vld [vmem:[%s483] sm:$0x2]
    %vm485 = vcmask 1041409
    %v486 = vsel %vm485, %v484, %v482
    %s487 = scalar_lea.vmem %s0, 358
    %s488 = smov 12
    %v489 = vld [vmem:[%s487] ss:$-112 sm:%s488]
    %vm490 = vcmask 1043458
    %v491 = vsel %vm490, %v489, %v486
    %s492 = scalar_lea.vmem %s0, 82
    %v493 = vld [vmem:[%s492] sm:$0x10]
    %vm494 = vcmask 1044484
    %v495 = vsel %vm494, %v493, %v491
    %s496 = scalar_lea.vmem %s0, 710
    %s497 = smov 96
    %v498 = vld [vmem:[%s496] ss:$-112 sm:%s497]
    %vm499 = vcmask 1046533
    %v500 = vsel %vm499, %v498, %v495
    %s501 = scalar_lea.vmem %s0, 95
    %v502 = vld [vmem:[%s501] sm:$0x80]
    %vm503 = vcmask 1047559
    %v504 = vsel %vm503, %v502, %v500
    %505 = vrot.lane.b32.xlu0 %v504, 48
    %v506 = vpop.permute.xlu0 %505
    %vm507 = vcmask 458112
    %508 = vst.msk [vmem:[#allocation0] sm:$0x7] %vm507, %v506
    %s509 = scalar_lea.vmem [#allocation0], 5
    %510 = vst.msk [vmem:[%s509] sm:$0x38] %vm507, %v506
    %s511 = scalar_lea.vmem [#allocation0], 10
    %512 = vst.msk [vmem:[%s511] sm:$0xc0] %vm507, %v506
    %s513 = scalar_lea.vmem %s0, 166
    %s514 = smov 3
    %v515 = vld [vmem:[%s513] ss:$-112 sm:%s514]
    %s516 = scalar_lea.vmem %s0, 116
    %v517 = vld [vmem:[%s516] sm:$0x4]
    %vm518 = vcmask 1042434
    %v519 = vsel %vm518, %v517, %v515
    %s520 = scalar_lea.vmem %s0, 179
    %v521 = vld [vmem:[%s520] sm:$0x8]
    %vm522 = vcmask 1043459
    %v523 = vsel %vm522, %v521, %v519
    %524 = vrot.lane.b32.xlu0 %v523, 48
    %v525 = vpop.permute.xlu0 %524
    %vm526 = vcmask 458112
    %s527 = scalar_lea.vmem [#allocation0], 18
    %528 = vst.msk [vmem:[%s527] ss:$6 sm:$0x3] %vm526, %v525
    %s529 = scalar_lea.vmem [#allocation0], 23
    %530 = vst.msk [vmem:[%s529] sm:$0xc] %vm526, %v525
    %s531 = scalar_lea.vmem %s0, 5
    %v532 = vld [vmem:[%s531] sm:$0x1]
    %s533 = scalar_lea.vmem %s0, 68
    %v534 = vld [vmem:[%s533] sm:$0x2]
    %vm535 = vcmask 1041409
    %v536 = vsel %vm535, %v534, %v532
    %s537 = scalar_lea.vmem %s0, 357
    %s538 = smov 12
    %v539 = vld [vmem:[%s537] ss:$-112 sm:%s538]
    %vm540 = vcmask 1043458
    %v541 = vsel %vm540, %v539, %v536
    %s542 = scalar_lea.vmem %s0, 81
    %v543 = vld [vmem:[%s542] sm:$0x10]
    %vm544 = vcmask 1044484
    %v545 = vsel %vm544, %v543, %v541
    %s546 = scalar_lea.vmem %s0, 709
    %s547 = smov 96
    %v548 = vld [vmem:[%s546] ss:$-112 sm:%s547]
    %vm549 = vcmask 1046533
    %v550 = vsel %vm549, %v548, %v545
    %s551 = scalar_lea.vmem %s0, 94
    %v552 = vld [vmem:[%s551] sm:$0x80]
    %vm553 = vcmask 1047559
    %v554 = vsel %vm553, %v552, %v550
    %555 = vrot.lane.b32.xlu0 %v554, 40
    %v556 = vpop.permute.xlu0 %555
    %vm557 = vcmask 392512
    %558 = vst.msk [vmem:[#allocation0] sm:$0x7] %vm557, %v556
    %s559 = scalar_lea.vmem [#allocation0], 5
    %560 = vst.msk [vmem:[%s559] sm:$0x38] %vm557, %v556
    %s561 = scalar_lea.vmem [#allocation0], 10
    %562 = vst.msk [vmem:[%s561] sm:$0xc0] %vm557, %v556
    %s563 = scalar_lea.vmem %s0, 165
    %s564 = smov 3
    %v565 = vld [vmem:[%s563] ss:$-112 sm:%s564]
    %s566 = scalar_lea.vmem %s0, 115
    %v567 = vld [vmem:[%s566] sm:$0x4]
    %vm568 = vcmask 1042434
    %v569 = vsel %vm568, %v567, %v565
    %s570 = scalar_lea.vmem %s0, 178
    %v571 = vld [vmem:[%s570] sm:$0x8]
    %vm572 = vcmask 1043459
    %v573 = vsel %vm572, %v571, %v569
    %574 = vrot.lane.b32.xlu0 %v573, 40
    %v575 = vpop.permute.xlu0 %574
    %vm576 = vcmask 392512
    %s577 = scalar_lea.vmem [#allocation0], 18
    %578 = vst.msk [vmem:[%s577] ss:$6 sm:$0x3] %vm576, %v575
    %s579 = scalar_lea.vmem [#allocation0], 23
    %580 = vst.msk [vmem:[%s579] sm:$0xc] %vm576, %v575
    %s581 = scalar_lea.vmem %s0, 4
    %v582 = vld [vmem:[%s581] sm:$0x1]
    %s583 = scalar_lea.vmem %s0, 67
    %v584 = vld [vmem:[%s583] sm:$0x2]
    %vm585 = vcmask 1041409
    %v586 = vsel %vm585, %v584, %v582
    %s587 = scalar_lea.vmem %s0, 356
    %s588 = smov 12
    %v589 = vld [vmem:[%s587] ss:$-112 sm:%s588]
    %vm590 = vcmask 1043458
    %v591 = vsel %vm590, %v589, %v586
    %s592 = scalar_lea.vmem %s0, 80
    %v593 = vld [vmem:[%s592] sm:$0x10]
    %vm594 = vcmask 1044484
    %v595 = vsel %vm594, %v593, %v591
    %s596 = scalar_lea.vmem %s0, 708
    %s597 = smov 96
    %v598 = vld [vmem:[%s596] ss:$-112 sm:%s597]
    %vm599 = vcmask 1046533
    %v600 = vsel %vm599, %v598, %v595
    %s601 = scalar_lea.vmem %s0, 93
    %v602 = vld [vmem:[%s601] sm:$0x80]
    %vm603 = vcmask 1047559
    %v604 = vsel %vm603, %v602, %v600
    %605 = vrot.lane.b32.xlu0 %v604, 32
    %v606 = vpop.permute.xlu0 %605
    %vm607 = vcmask 326912
    %608 = vst.msk [vmem:[#allocation0] sm:$0x7] %vm607, %v606
    %s609 = scalar_lea.vmem [#allocation0], 5
    %610 = vst.msk [vmem:[%s609] sm:$0x38] %vm607, %v606
    %s611 = scalar_lea.vmem [#allocation0], 10
    %612 = vst.msk [vmem:[%s611] sm:$0xc0] %vm607, %v606
    %s613 = scalar_lea.vmem %s0, 164
    %s614 = smov 3
    %v615 = vld [vmem:[%s613] ss:$-112 sm:%s614]
    %s616 = scalar_lea.vmem %s0, 114
    %v617 = vld [vmem:[%s616] sm:$0x4]
    %vm618 = vcmask 1042434
    %v619 = vsel %vm618, %v617, %v615
    %s620 = scalar_lea.vmem %s0, 177
    %v621 = vld [vmem:[%s620] sm:$0x8]
    %vm622 = vcmask 1043459
    %v623 = vsel %vm622, %v621, %v619
    %624 = vrot.lane.b32.xlu0 %v623, 32
    %v625 = vpop.permute.xlu0 %624
    %vm626 = vcmask 326912
    %s627 = scalar_lea.vmem [#allocation0], 18
    %628 = vst.msk [vmem:[%s627] ss:$6 sm:$0x3] %vm626, %v625
    %s629 = scalar_lea.vmem [#allocation0], 23
    %630 = vst.msk [vmem:[%s629] sm:$0xc] %vm626, %v625
    %s631 = scalar_lea.vmem %s0, 3
    %v632 = vld [vmem:[%s631] sm:$0x1]
    %s633 = scalar_lea.vmem %s0, 66
    %v634 = vld [vmem:[%s633] sm:$0x2]
    %vm635 = vcmask 1041409
    %v636 = vsel %vm635, %v634, %v632
    %s637 = scalar_lea.vmem %s0, 355
    %s638 = smov 12
    %v639 = vld [vmem:[%s637] ss:$-112 sm:%s638]
    %vm640 = vcmask 1043458
    %v641 = vsel %vm640, %v639, %v636
    %s642 = scalar_lea.vmem %s0, 79
    %v643 = vld [vmem:[%s642] sm:$0x10]
    %vm644 = vcmask 1044484
    %v645 = vsel %vm644, %v643, %v641
    %s646 = scalar_lea.vmem %s0, 707
    %s647 = smov 96
    %v648 = vld [vmem:[%s646] ss:$-112 sm:%s647]
    %vm649 = vcmask 1046533
    %v650 = vsel %vm649, %v648, %v645
    %s651 = scalar_lea.vmem %s0, 92
    %v652 = vld [vmem:[%s651] sm:$0x80]
    %vm653 = vcmask 1047559
    %v654 = vsel %vm653, %v652, %v650
    %655 = vrot.lane.b32.xlu0 %v654, 24
    %v656 = vpop.permute.xlu0 %655
    %vm657 = vcmask 261312
    %658 = vst.msk [vmem:[#allocation0] sm:$0x7] %vm657, %v656
    %s659 = scalar_lea.vmem [#allocation0], 5
    %660 = vst.msk [vmem:[%s659] sm:$0x38] %vm657, %v656
    %s661 = scalar_lea.vmem [#allocation0], 10
    %662 = vst.msk [vmem:[%s661] sm:$0xc0] %vm657, %v656
    %s663 = scalar_lea.vmem %s0, 163
    %s664 = smov 3
    %v665 = vld [vmem:[%s663] ss:$-112 sm:%s664]
    %s666 = scalar_lea.vmem %s0, 113
    %v667 = vld [vmem:[%s666] sm:$0x4]
    %vm668 = vcmask 1042434
    %v669 = vsel %vm668, %v667, %v665
    %s670 = scalar_lea.vmem %s0, 176
    %v671 = vld [vmem:[%s670] sm:$0x8]
    %vm672 = vcmask 1043459
    %v673 = vsel %vm672, %v671, %v669
    %674 = vrot.lane.b32.xlu0 %v673, 24
    %v675 = vpop.permute.xlu0 %674
    %vm676 = vcmask 261312
    %s677 = scalar_lea.vmem [#allocation0], 18
    %678 = vst.msk [vmem:[%s677] ss:$6 sm:$0x3] %vm676, %v675
    %s679 = scalar_lea.vmem [#allocation0], 23
    %680 = vst.msk [vmem:[%s679] sm:$0xc] %vm676, %v675
    %s681 = scalar_lea.vmem %s0, 2
    %v682 = vld [vmem:[%s681] sm:$0x1]
    %s683 = scalar_lea.vmem %s0, 65
    %v684 = vld [vmem:[%s683] sm:$0x2]
    %vm685 = vcmask 1041409
    %v686 = vsel %vm685, %v684, %v682
    %s687 = scalar_lea.vmem %s0, 354
    %s688 = smov 12
    %v689 = vld [vmem:[%s687] ss:$-112 sm:%s688]
    %vm690 = vcmask 1043458
    %v691 = vsel %vm690, %v689, %v686
    %s692 = scalar_lea.vmem %s0, 78
    %v693 = vld [vmem:[%s692] sm:$0x10]
    %vm694 = vcmask 1044484
    %v695 = vsel %vm694, %v693, %v691
    %s696 = scalar_lea.vmem %s0, 706
    %s697 = smov 96
    %v698 = vld [vmem:[%s696] ss:$-112 sm:%s697]
    %vm699 = vcmask 1046533
    %v700 = vsel %vm699, %v698, %v695
    %s701 = scalar_lea.vmem %s0, 91
    %v702 = vld [vmem:[%s701] sm:$0x80]
    %vm703 = vcmask 1047559
    %v704 = vsel %vm703, %v702, %v700
    %705 = vrot.lane.b32.xlu0 %v704, 16
    %v706 = vpop.permute.xlu0 %705
    %vm707 = vcmask 195712
    %708 = vst.msk [vmem:[#allocation0] sm:$0x7] %vm707, %v706
    %s709 = scalar_lea.vmem [#allocation0], 5
    %710 = vst.msk [vmem:[%s709] sm:$0x38] %vm707, %v706
    %s711 = scalar_lea.vmem [#allocation0], 10
    %712 = vst.msk [vmem:[%s711] sm:$0xc0] %vm707, %v706
    %s713 = scalar_lea.vmem %s0, 162
    %s714 = smov 3
    %v715 = vld [vmem:[%s713] ss:$-112 sm:%s714]
    %s716 = scalar_lea.vmem %s0, 112
    %v717 = vld [vmem:[%s716] sm:$0x4]
    %vm718 = vcmask 1042434
    %v719 = vsel %vm718, %v717, %v715
    %s720 = scalar_lea.vmem %s0, 175
    %v721 = vld [vmem:[%s720] sm:$0x8]
    %vm722 = vcmask 1043459
    %v723 = vsel %vm722, %v721, %v719
    %724 = vrot.lane.b32.xlu0 %v723, 16
    %v725 = vpop.permute.xlu0 %724
    %vm726 = vcmask 195712
    %s727 = scalar_lea.vmem [#allocation0], 18
    %728 = vst.msk [vmem:[%s727] ss:$6 sm:$0x3] %vm726, %v725
    %s729 = scalar_lea.vmem [#allocation0], 23
    %730 = vst.msk [vmem:[%s729] sm:$0xc] %vm726, %v725
    %s731 = scalar_lea.vmem %s0, 1
    %v732 = vld [vmem:[%s731] sm:$0x1]
    %s733 = scalar_lea.vmem %s0, 64
    %v734 = vld [vmem:[%s733] sm:$0x2]
    %vm735 = vcmask 1041409
    %v736 = vsel %vm735, %v734, %v732
    %s737 = scalar_lea.vmem %s0, 353
    %s738 = smov 12
    %v739 = vld [vmem:[%s737] ss:$-112 sm:%s738]
    %vm740 = vcmask 1043458
    %v741 = vsel %vm740, %v739, %v736
    %s742 = scalar_lea.vmem %s0, 77
    %v743 = vld [vmem:[%s742] sm:$0x10]
    %vm744 = vcmask 1044484
    %v745 = vsel %vm744, %v743, %v741
    %s746 = scalar_lea.vmem %s0, 705
    %s747 = smov 96
    %v748 = vld [vmem:[%s746] ss:$-112 sm:%s747]
    %vm749 = vcmask 1046533
    %v750 = vsel %vm749, %v748, %v745
    %s751 = scalar_lea.vmem %s0, 90
    %v752 = vld [vmem:[%s751] sm:$0x80]
    %vm753 = vcmask 1047559
    %v754 = vsel %vm753, %v752, %v750
    %755 = vrot.lane.b32.xlu0 %v754, 8
    %v756 = vpop.permute.xlu0 %755
    %vm757 = vcmask 130112
    %758 = vst.msk [vmem:[#allocation0] sm:$0x7] %vm757, %v756
    %s759 = scalar_lea.vmem [#allocation0], 5
    %760 = vst.msk [vmem:[%s759] sm:$0x38] %vm757, %v756
    %s761 = scalar_lea.vmem [#allocation0], 10
    %762 = vst.msk [vmem:[%s761] sm:$0xc0] %vm757, %v756
    %s763 = scalar_lea.vmem %s0, 161
    %s764 = smov 3
    %v765 = vld [vmem:[%s763] ss:$-112 sm:%s764]
    %s766 = scalar_lea.vmem %s0, 111
    %v767 = vld [vmem:[%s766] sm:$0x4]
    %vm768 = vcmask 1042434
    %v769 = vsel %vm768, %v767, %v765
    %s770 = scalar_lea.vmem %s0, 174
    %v771 = vld [vmem:[%s770] sm:$0x8]
    %vm772 = vcmask 1043459
    %v773 = vsel %vm772, %v771, %v769
    %774 = vrot.lane.b32.xlu0 %v773, 8
    %v775 = vpop.permute.xlu0 %774
    %vm776 = vcmask 130112
    %s777 = scalar_lea.vmem [#allocation0], 18
    %778 = vst.msk [vmem:[%s777] ss:$6 sm:$0x3] %vm776, %v775
    %s779 = scalar_lea.vmem [#allocation0], 23
    %780 = vst.msk [vmem:[%s779] sm:$0xc] %vm776, %v775
    %s782 = sshllo.u32 0, 4
    %v784 = vld [vmem:[#allocation0] sm:%s782]
    %s785 = sshllo.u32 0, 4
    %786 = vst [vmem:[%s1] sm:%s785] %v784
    %s787 = scalar_lea.vmem [#allocation0], 8
    %v788 = vld [vmem:[%s787] sm:%s782]
    %s789 = sshllo.u32 0, 4
    %s790 = scalar_lea.vmem %s1, 4
    %791 = vst [vmem:[%s790] sm:%s789] %v788
    %s792 = scalar_lea.vmem [#allocation0], 16
    %v793 = vld [vmem:[%s792] sm:%s782]
    %s794 = sshllo.u32 0, 4
    %s795 = smul.addr 4, 2
    %s796 = scalar_lea.vmem %s1, %s795
    %797 = vst [vmem:[%s796] sm:%s794] %v793
    %s798 = scalar_lea.vmem [#allocation0], 24
    %v799 = vld [vmem:[%s798] sm:%s782]
    %s800 = sshllo.u32 0, 4
    %s801 = smul.addr 4, 3
    %s802 = scalar_lea.vmem %s1, %s801
    %803 = vst [vmem:[%s802] sm:%s800] %v799

// kernel: diffeomorphic_transform.7
$region0: #{diffeomorphic_transform.7}
  #allocation0 [shape = 'u32[]', space=smem, size = 0x4, offset = 0x4, fixed_abs, tag = 'smem constant byte address 0x4 - core index']
  #allocation1 [shape = 'u32[144,128]{1,0:T(1,128)}', space=vmem, size = 0x12000, scoped, tag = 'internal scratch']
  %s0 = inlined_call_operand.vmem [shape: f32[3,512], index: 0, kind: input, shape index: {}]
  %s1 = inlined_call_operand.vmem [shape: f32[24,512], index: 1, kind: input, shape index: {}]
  %s2 = inlined_call_operand.vmem [shape: f32[3,512], index: 2, kind: output, shape index: {}]
  %s3 = sld [smem:[#allocation0]]
  $region41: #{diffeomorphic_transform.7} parent=0
    _
  %s5 = ssub.s32 1, %s3
  %s6 = scalar_select 0, %s5, %s3
  loop: start=0, step=1, limit=6
  $region2: #{diffeomorphic_transform.7} parent=0 // loop_pre_header
    _
  $region3: #{diffeomorphic_transform.7} parent=0 // loop_header
    %s8 = sphi 0, %s12
    %p9 = scmp.ge.s32.totalorder %s8, 6
    %s18 = sphi 0, %s20
    %s21 = sphi 0, %s18
    %s22 = sphi 0, %s21
    %s38 = sphi 0, %s22
    %s42 = sphi 0, %s42
    %s44 = sphi 0, %s42
    %s45 = sphi 0, %s44
    %s59 = sphi 0, %s45
    %s65 = sphi 0, %s67
    %s68 = sphi 0, %s65
    %s69 = sphi 0, %s68
    %s85 = sphi 0, %s69
  $region4: #{diffeomorphic_transform.7} parent=0 // loop_header_branch
    %11 = sbr.rel (%p9) target = $region8
  $region5: #{diffeomorphic_transform.7} parent=0 // loop_body
    %s13 = ssub.s32 %s8, 1
    %s14 = ssub.s32 %s8, 2
    %s15 = sadd.s32 %s8, 1
    %s16 = ssub.s32 %s8, %s15
    %p17 = scmp.eq.s32.totalorder %s16, 0
    %s19 = sadd.s32 %s18, 1
    %s20 = scalar_select %p17, %s18, %s19
    %p23 = pneg %p17
    %p24 = scmp.eq.s32.totalorder %s8, 3
    %p25 = por %p23, %p24
    %p26 = scmp.ne.s32.totalorder %s18, %s21
    %p27 = scmp.eq.s32.totalorder %s8, 0
    %p28 = por %p26, %p27
    %p29 = scmp.ne.s32.totalorder %s18, %s21
    %p30 = scmp.eq.s32.totalorder %s13, 3
    %p31 = por %p29, %p30
    %p32 = scmp.ne.s32.totalorder %s21, %s22
    %p33 = scmp.eq.s32.totalorder %s13, 0
    %p34 = por %p32, %p33
    %p35 = scmp.ne.s32.totalorder %s21, %s22
    %p36 = scmp.eq.s32.totalorder %s14, 3
    %p37 = por %p35, %p36
    %p39 = scmp.ne.s32.totalorder %s22, %s38
    %p40 = scmp.eq.s32.totalorder %s14, 0
    %p41 = por %p39, %p40
    %s43 = sadd.s32 %s42, 1
    %p46 = scmp.eq.s32.totalorder %s8, 3
    %p47 = scmp.ne.s32.totalorder %s42, %s44
    %p48 = scmp.eq.s32.totalorder %s8, 0
    %p49 = por %p47, %p48
    %p50 = scmp.ne.s32.totalorder %s42, %s44
    %p51 = scmp.eq.s32.totalorder %s13, 3
    %p52 = por %p50, %p51
    %p53 = scmp.ne.s32.totalorder %s44, %s45
    %p54 = scmp.eq.s32.totalorder %s13, 0
    %p55 = por %p53, %p54
    %p56 = scmp.ne.s32.totalorder %s44, %s45
    %p57 = scmp.eq.s32.totalorder %s14, 3
    %p58 = por %p56, %p57
    %p60 = scmp.ne.s32.totalorder %s45, %s59
    %p61 = scmp.eq.s32.totalorder %s14, 0
    %p62 = por %p60, %p61
    %s63 = ssub.s32 %s8, %s15
    %p64 = scmp.eq.s32.totalorder %s63, 0
    %s66 = sadd.s32 %s65, 1
    %s67 = scalar_select %p64, %s65, %s66
    %p70 = pneg %p64
    %p71 = scmp.eq.s32.totalorder %s8, 3
    %p72 = por %p70, %p71
    %p73 = scmp.ne.s32.totalorder %s65, %s68
    %p74 = scmp.eq.s32.totalorder %s8, 0
    %p75 = por %p73, %p74
    %p76 = scmp.ne.s32.totalorder %s65, %s68
    %p77 = scmp.eq.s32.totalorder %s13, 3
    %p78 = por %p76, %p77
    %p79 = scmp.ne.s32.totalorder %s68, %s69
    %p80 = scmp.eq.s32.totalorder %s13, 0
    %p81 = por %p79, %p80
    %p82 = scmp.ne.s32.totalorder %s68, %s69
    %p83 = scmp.eq.s32.totalorder %s14, 3
    %p84 = por %p82, %p83
    %p86 = scmp.ne.s32.totalorder %s69, %s85
    %p87 = scmp.eq.s32.totalorder %s14, 0
    %p88 = por %p86, %p87
    %p89 = scmp.le.s32.totalorder 1, %s8
    %p90 = scmp.lt.s32.totalorder %s8, 5
    %p91 = pnand %p89, %p90
    %p92 = pneg %p91
    // Predicated region
    $region9: #{diffeomorphic_transform.7} parent=5 // pred_check
      _
    $region10: #{diffeomorphic_transform.7} parent=5 // pred_check_branch
      %94 = sbr.rel (%p91) target = $region12
    $region11: #{diffeomorphic_transform.7} parent=5 // pred_region
      %s95 = ssub.s32 %s8, 1
      // Predicated region
      $region13: #{diffeomorphic_transform.7} parent=11 // pred_check
        %p96 = pneg %p55
      $region14: #{diffeomorphic_transform.7} parent=11 // pred_check_branch
        %98 = sbr.rel (%p96) target = $region16
      $region15: #{diffeomorphic_transform.7} parent=11 // pred_region
        _
      $region16: #{diffeomorphic_transform.7} parent=11 // pred_fallthru
        _
    $region12: #{diffeomorphic_transform.7} parent=5 // pred_fallthru
      _
    %p99 = scmp.lt.s32.totalorder %s8, 4
    // Predicated region
    $region17: #{diffeomorphic_transform.7} parent=5 // pred_check
      %p100 = pneg %p99
    $region18: #{diffeomorphic_transform.7} parent=5 // pred_check_branch
      %102 = sbr.rel (%p100) target = $region20
    $region19: #{diffeomorphic_transform.7} parent=5 // pred_region
      // Predicated region
      $region21: #{diffeomorphic_transform.7} parent=19 // pred_check
        %p103 = pneg %p28
      $region22: #{diffeomorphic_transform.7} parent=19 // pred_check_branch
        %105 = sbr.rel (%p103) target = $region24
      $region23: #{diffeomorphic_transform.7} parent=19 // pred_region
        %p106 = scmp.lt.s32.totalorder %s8, 3
        %s107 = scalar_select %p106, %s8, 3
        %s108 = smul.addr %s107, 4
        %s109 = scalar_lea.vmem %s0, %s108
      $region24: #{diffeomorphic_transform.7} parent=19 // pred_fallthru
        _
    $region20: #{diffeomorphic_transform.7} parent=5 // pred_fallthru
      _
    %p110 = scmp.le.s32.totalorder 1, %s8
    %p111 = scmp.lt.s32.totalorder %s8, 5
    %p112 = pnand %p110, %p111
    %p113 = pneg %p112
    // Predicated region
    $region25: #{diffeomorphic_transform.7} parent=5 // pred_check
      _
    $region26: #{diffeomorphic_transform.7} parent=5 // pred_check_branch
      %115 = sbr.rel (%p112) target = $region28
    $region27: #{diffeomorphic_transform.7} parent=5 // pred_region
      %s116 = ssub.s32 %s8, 1
      %p117 = scmp.lt.s32.totalorder %s13, 3
      %s118 = scalar_select %p117, %s13, 3
      %s119 = smul.addr %s118, 4
      %s120 = scalar_lea.vmem %s0, %s119
      %p121 = pneg %p34
      %p122 = pneg %p31
      %p123 = pneg %p55
      %p124 = pneg %p52
      %p125 = pneg %p81
      %p126 = pneg %p78
      %p127 = scmp.lt.s32.totalorder %s13, 3
      %s128 = scalar_select %p127, %s13, 3
      %s129 = smul.addr %s128, 4
      %s130 = scalar_lea.vmem %s2, %s129
      %p131 = scmp.lt.s32.totalorder %s13, 3
      %s132 = scalar_select %p131, %s13, 3
      %s133 = smul.addr %s132, 4
      %s134 = scalar_lea.vmem %s0, %s133
      %p135 = scmp.lt.s32.totalorder %s13, 3
      %s136 = scalar_select %p135, %s13, 3
      %s137 = smul.addr %s136, 4
      %s138 = scalar_lea.vmem %s2, %s137
      %v139 = vld [vmem:[%s134] sm:$0x7]
      %v140 = vfloor.f32 %v139
      %v141 = vmax.f32 %v140, 0.0
      %v142 = vmin.f32 %v141, 6.0
      %v143 = vsub.f32 %v139, %v142
      %v144 = vand.u32 2147483647, %v143
      %v145 = vsub.f32 1.0, %v144
      %v146 = vmax.f32 %v145, 0.0
      %v147 = vsub.f32 %v143, 1.0
      %v148 = vand.u32 2147483647, %v147
      %v149 = vsub.f32 1.0, %v148
      %v150 = vmax.f32 %v149, 0.0
      %v151 = vcvt.f32.s32.to.zero.pseudo %v142
      %v152 = vmul.u32 %v151, 64
      %v153 = vmul.u32 %v151, 8
      %v154 = vrot.slane %v153, 7
      %v155 = vadd.s32 %v152, %v154
      %v156 = vrot.slane %v151, 6
      %v157 = vadd.s32 %v155, %v156
      %v158 = vlaneseq
      %v159 = vshrl.u32 %v158, 7
      %v160 = vadd.s32 %v159, 8
      %v161 = vadd.s32 %v159, 16
      %v162 = vadd.s32 %v159, 24
      %v163 = vadd.s32 %v159, 32
      %v164 = vadd.s32 %v159, 40
      %v165 = vadd.s32 %v159, 48
      %v166 = vadd.s32 %v159, 56
      %v167 = vadd.s32 %v159, 64
      %v168 = vadd.s32 %v159, 72
      %v169 = vadd.s32 %v159, 80
      %v170 = vadd.s32 %v159, 88
      %v171 = vadd.s32 %v159, 96
      %v172 = vadd.s32 %v159, 104
      %v173 = vadd.s32 %v159, 112
      %v174 = vadd.s32 %v159, 120
      %v175 = vadd.s32 %v159, 128
      %v176 = vadd.s32 %v159, 136
      %v177 = vadd.s32 %v159, 144
      %v178 = vadd.s32 %v159, 152
      %v179 = vadd.s32 %v159, 160
      %v180 = vadd.s32 %v159, 168
      %v181 = vadd.s32 %v159, 176
      %v182 = vadd.s32 %v159, 184
      %v183 = vadd.s32 %v159, 192
      %v184 = vadd.s32 %v159, 200
      %v185 = vadd.s32 %v159, 208
      %v186 = vadd.s32 %v159, 216
      %v187 = vadd.s32 %v159, 224
      %v188 = vadd.s32 %v159, 232
      %v189 = vadd.s32 %v159, 240
      %v190 = vadd.s32 %v159, 248
      %v191 = vadd.s32 %v159, 256
      %v192 = vadd.s32 %v159, 264
      %v193 = vadd.s32 %v159, 272
      %v194 = vadd.s32 %v159, 280
      %v195 = vadd.s32 %v159, 288
      %v196 = vadd.s32 %v159, 296
      %v197 = vadd.s32 %v159, 304
      %v198 = vadd.s32 %v159, 312
      %v199 = vadd.s32 %v159, 320
      %v200 = vadd.s32 %v159, 328
      %v201 = vadd.s32 %v159, 336
      %v202 = vadd.s32 %v159, 344
      %v203 = vadd.s32 %v159, 352
      %v204 = vadd.s32 %v159, 360
      %v205 = vadd.s32 %v159, 368
      %v206 = vadd.s32 %v159, 376
      %v207 = vadd.s32 %v159, 384
      %v208 = vadd.s32 %v159, 392
      %v209 = vadd.s32 %v159, 400
      %v210 = vadd.s32 %v159, 408
      %v211 = vadd.s32 %v159, 416
      %v212 = vadd.s32 %v159, 424
      %v213 = vadd.s32 %v159, 432
      %v214 = vadd.s32 %v159, 440
      %v215 = vadd.s32 %v159, 448
      %v216 = vadd.s32 %v159, 456
      %v217 = vadd.s32 %v159, 464
      %v218 = vadd.s32 %v159, 472
      %v219 = vadd.s32 %v159, 480
      %v220 = vadd.s32 %v159, 488
      %v221 = vadd.s32 %v159, 496
      %v222 = vadd.s32 %v159, 504
      %v223 = vlaneseq
      %v224 = vshrl.u32 %v223, 7
      %v225 = vsub.s32 2, %v224
      %v226 = vrot.slane %v157, %v225
      %vm227 = vcmp.eq.s32.totalorder %v159, %v226
      %vm228 = vcmp.eq.s32.totalorder %v160, %v226
      %vm229 = vcmp.eq.s32.totalorder %v161, %v226
      %vm230 = vcmp.eq.s32.totalorder %v162, %v226
      %vm231 = vcmp.eq.s32.totalorder %v163, %v226
      %vm232 = vcmp.eq.s32.totalorder %v164, %v226
      %vm233 = vcmp.eq.s32.totalorder %v165, %v226
      %vm234 = vcmp.eq.s32.totalorder %v166, %v226
      %vm235 = vcmp.eq.s32.totalorder %v167, %v226
      %vm236 = vcmp.eq.s32.totalorder %v168, %v226
      %vm237 = vcmp.eq.s32.totalorder %v169, %v226
      %vm238 = vcmp.eq.s32.totalorder %v170, %v226
      %vm239 = vcmp.eq.s32.totalorder %v171, %v226
      %vm240 = vcmp.eq.s32.totalorder %v172, %v226
      %vm241 = vcmp.eq.s32.totalorder %v173, %v226
      %vm242 = vcmp.eq.s32.totalorder %v174, %v226
      %vm243 = vcmp.eq.s32.totalorder %v175, %v226
      %vm244 = vcmp.eq.s32.totalorder %v176, %v226
      %vm245 = vcmp.eq.s32.totalorder %v177, %v226
      %vm246 = vcmp.eq.s32.totalorder %v178, %v226
      %vm247 = vcmp.eq.s32.totalorder %v179, %v226
      %vm248 = vcmp.eq.s32.totalorder %v180, %v226
      %vm249 = vcmp.eq.s32.totalorder %v181, %v226
      %vm250 = vcmp.eq.s32.totalorder %v182, %v226
      %vm251 = vcmp.eq.s32.totalorder %v183, %v226
      %vm252 = vcmp.eq.s32.totalorder %v184, %v226
      %vm253 = vcmp.eq.s32.totalorder %v185, %v226
      %vm254 = vcmp.eq.s32.totalorder %v186, %v226
      %vm255 = vcmp.eq.s32.totalorder %v187, %v226
      %vm256 = vcmp.eq.s32.totalorder %v188, %v226
      %vm257 = vcmp.eq.s32.totalorder %v189, %v226
      %vm258 = vcmp.eq.s32.totalorder %v190, %v226
      %vm259 = vcmp.eq.s32.totalorder %v191, %v226
      %vm260 = vcmp.eq.s32.totalorder %v192, %v226
      %vm261 = vcmp.eq.s32.totalorder %v193, %v226
      %vm262 = vcmp.eq.s32.totalorder %v194, %v226
      %vm263 = vcmp.eq.s32.totalorder %v195, %v226
      %vm264 = vcmp.eq.s32.totalorder %v196, %v226
      %vm265 = vcmp.eq.s32.totalorder %v197, %v226
      %vm266 = vcmp.eq.s32.totalorder %v198, %v226
      %vm267 = vcmp.eq.s32.totalorder %v199, %v226
      %vm268 = vcmp.eq.s32.totalorder %v200, %v226
      %vm269 = vcmp.eq.s32.totalorder %v201, %v226
      %vm270 = vcmp.eq.s32.totalorder %v202, %v226
      %vm271 = vcmp.eq.s32.totalorder %v203, %v226
      %vm272 = vcmp.eq.s32.totalorder %v204, %v226
      %vm273 = vcmp.eq.s32.totalorder %v205, %v226
      %vm274 = vcmp.eq.s32.totalorder %v206, %v226
      %vm275 = vcmp.eq.s32.totalorder %v207, %v226
      %vm276 = vcmp.eq.s32.totalorder %v208, %v226
      %vm277 = vcmp.eq.s32.totalorder %v209, %v226
      %vm278 = vcmp.eq.s32.totalorder %v210, %v226
      %vm279 = vcmp.eq.s32.totalorder %v211, %v226
      %vm280 = vcmp.eq.s32.totalorder %v212, %v226
      %vm281 = vcmp.eq.s32.totalorder %v213, %v226
      %vm282 = vcmp.eq.s32.totalorder %v214, %v226
      %vm283 = vcmp.eq.s32.totalorder %v215, %v226
      %vm284 = vcmp.eq.s32.totalorder %v216, %v226
      %vm285 = vcmp.eq.s32.totalorder %v217, %v226
      %vm286 = vcmp.eq.s32.totalorder %v218, %v226
      %vm287 = vcmp.eq.s32.totalorder %v219, %v226
      %vm288 = vcmp.eq.s32.totalorder %v220, %v226
      %vm289 = vcmp.eq.s32.totalorder %v221, %v226
      %vm290 = vcmp.eq.s32.totalorder %v222, %v226
      %v291 = vsel %vm227, 1.0, 0.0
      %v292 = vsel %vm228, 1.0, 0.0
      %v293 = vsel %vm229, 1.0, 0.0
      %v294 = vsel %vm230, 1.0, 0.0
      %v295 = vsel %vm231, 1.0, 0.0
      %v296 = vsel %vm232, 1.0, 0.0
      %v297 = vsel %vm233, 1.0, 0.0
      %v298 = vsel %vm234, 1.0, 0.0
      %v299 = vsel %vm235, 1.0, 0.0
      %v300 = vsel %vm236, 1.0, 0.0
      %v301 = vsel %vm237, 1.0, 0.0
      %v302 = vsel %vm238, 1.0, 0.0
      %v303 = vsel %vm239, 1.0, 0.0
      %v304 = vsel %vm240, 1.0, 0.0
      %v305 = vsel %vm241, 1.0, 0.0
      %v306 = vsel %vm242, 1.0, 0.0
      %v307 = vsel %vm243, 1.0, 0.0
      %v308 = vsel %vm244, 1.0, 0.0
      %v309 = vsel %vm245, 1.0, 0.0
      %v310 = vsel %vm246, 1.0, 0.0
      %v311 = vsel %vm247, 1.0, 0.0
      %v312 = vsel %vm248, 1.0, 0.0
      %v313 = vsel %vm249, 1.0, 0.0
      %v314 = vsel %vm250, 1.0, 0.0
      %v315 = vsel %vm251, 1.0, 0.0
      %v316 = vsel %vm252, 1.0, 0.0
      %v317 = vsel %vm253, 1.0, 0.0
      %v318 = vsel %vm254, 1.0, 0.0
      %v319 = vsel %vm255, 1.0, 0.0
      %v320 = vsel %vm256, 1.0, 0.0
      %v321 = vsel %vm257, 1.0, 0.0
      %v322 = vsel %vm258, 1.0, 0.0
      %v323 = vsel %vm259, 1.0, 0.0
      %v324 = vsel %vm260, 1.0, 0.0
      %v325 = vsel %vm261, 1.0, 0.0
      %v326 = vsel %vm262, 1.0, 0.0
      %v327 = vsel %vm263, 1.0, 0.0
      %v328 = vsel %vm264, 1.0, 0.0
      %v329 = vsel %vm265, 1.0, 0.0
      %v330 = vsel %vm266, 1.0, 0.0
      %v331 = vsel %vm267, 1.0, 0.0
      %v332 = vsel %vm268, 1.0, 0.0
      %v333 = vsel %vm269, 1.0, 0.0
      %v334 = vsel %vm270, 1.0, 0.0
      %v335 = vsel %vm271, 1.0, 0.0
      %v336 = vsel %vm272, 1.0, 0.0
      %v337 = vsel %vm273, 1.0, 0.0
      %v338 = vsel %vm274, 1.0, 0.0
      %v339 = vsel %vm275, 1.0, 0.0
      %v340 = vsel %vm276, 1.0, 0.0
      %v341 = vsel %vm277, 1.0, 0.0
      %v342 = vsel %vm278, 1.0, 0.0
      %v343 = vsel %vm279, 1.0, 0.0
      %v344 = vsel %vm280, 1.0, 0.0
      %v345 = vsel %vm281, 1.0, 0.0
      %v346 = vsel %vm282, 1.0, 0.0
      %v347 = vsel %vm283, 1.0, 0.0
      %v348 = vsel %vm284, 1.0, 0.0
      %v349 = vsel %vm285, 1.0, 0.0
      %v350 = vsel %vm286, 1.0, 0.0
      %v351 = vsel %vm287, 1.0, 0.0
      %v352 = vsel %vm288, 1.0, 0.0
      %v353 = vsel %vm289, 1.0, 0.0
      %v354 = vsel %vm290, 1.0, 0.0
      %v355 = vld [vmem:[%s1] sm:$0xff]
      %v356 = vld [vmem:[%s1 + $0x8] sm:$0xff]
      %v357 = vld [vmem:[%s1 + $0x10] sm:$0xff]
      %v358 = vld [vmem:[%s1 + $0x18] sm:$0xff]
      %v359 = vld [vmem:[%s1 + $0x20] sm:$0xff]
      %v360 = vld [vmem:[%s1 + $0x28] sm:$0xff]
      %v361 = vld [vmem:[%s1 + $0x30] sm:$0xff]
      %v362 = vld [vmem:[%s1 + $0x38] sm:$0xff]
      %v363 = vld [vmem:[%s1 + $0x40] sm:$0xff]
      %v364 = vld [vmem:[%s1 + $0x48] sm:$0xff]
      %v365 = vld [vmem:[%s1 + $0x50] sm:$0xff]
      %v366 = vld [vmem:[%s1 + $0x58] sm:$0xff]
      %367 = vmatprep.subr.mxu0 0.0
      %368 = vmatpush1.msra.mxu0 %v291
      %369 = vmatprep.subr.mxu0 0.0
      %370 = vmatpush1.msra.mxu0 %v292
      %371 = vmatprep.subr.mxu0 0.0
      %372 = vmatpush1.msra.mxu0 %v293
      %373 = vmatprep.subr.mxu0 0.0
      %374 = vmatpush1.msra.mxu0 %v294
      %375 = vmatprep.subr.mxu0 0.0
      %376 = vmatpush1.msra.mxu0 %v295
      %377 = vmatprep.subr.mxu0 0.0
      %378 = vmatpush1.msra.mxu0 %v296
      %379 = vmatprep.subr.mxu0 0.0
      %380 = vmatpush1.msra.mxu0 %v297
      %381 = vmatprep.subr.mxu0 0.0
      %382 = vmatpush1.msra.mxu0 %v298
      %383 = vmatprep.subr.mxu0 0.0
      %384 = vmatpush1.msra.mxu0 %v299
      %385 = vmatprep.subr.mxu0 0.0
      %386 = vmatpush1.msra.mxu0 %v300
      %387 = vmatprep.subr.mxu0 0.0
      %388 = vmatpush1.msra.mxu0 %v301
      %389 = vmatprep.subr.mxu0 0.0
      %390 = vmatpush1.msra.mxu0 %v302
      %391 = vmatprep.subr.mxu0 0.0
      %392 = vmatpush1.msra.mxu0 %v303
      %393 = vmatprep.subr.mxu0 0.0
      %394 = vmatpush1.msra.mxu0 %v304
      %395 = vmatprep.subr.mxu0 0.0
      %396 = vmatpush1.msra.mxu0 %v305
      %397 = vmatprep.subr.mxu0 0.0
      %398 = vmatpush1.msra.mxu0 %v306
      %399 = vmatprep.subr.mxu0 0.0
      %400 = vmatpush1.msra.mxu0 %v307
      %401 = vmatprep.subr.mxu0 0.0
      %402 = vmatpush1.msra.mxu0 %v308
      %403 = vmatprep.subr.mxu0 0.0
      %404 = vmatpush1.msra.mxu0 %v309
      %405 = vmatprep.subr.mxu0 0.0
      %406 = vmatpush1.msra.mxu0 %v310
      %407 = vmatprep.subr.mxu0 0.0
      %408 = vmatpush1.msra.mxu0 %v311
      %409 = vmatprep.subr.mxu0 0.0
      %410 = vmatpush1.msra.mxu0 %v312
      %411 = vmatprep.subr.mxu0 0.0
      %412 = vmatpush1.msra.mxu0 %v313
      %413 = vmatprep.subr.mxu0 0.0
      %414 = vmatpush1.msra.mxu0 %v314
      %415 = vmatprep.subr.mxu0 0.0
      %416 = vmatpush1.msra.mxu0 %v315
      %417 = vmatprep.subr.mxu0 0.0
      %418 = vmatpush1.msra.mxu0 %v316
      %419 = vmatprep.subr.mxu0 0.0
      %420 = vmatpush1.msra.mxu0 %v317
      %421 = vmatprep.subr.mxu0 0.0
      %422 = vmatpush1.msra.mxu0 %v318
      %423 = vmatprep.subr.mxu0 0.0
      %424 = vmatpush1.msra.mxu0 %v319
      %425 = vmatprep.subr.mxu0 0.0
      %426 = vmatpush1.msra.mxu0 %v320
      %427 = vmatprep.subr.mxu0 0.0
      %428 = vmatpush1.msra.mxu0 %v321
      %429 = vmatprep.subr.mxu0 0.0
      %430 = vmatpush1.msra.mxu0 %v322
      %431 = vmatprep.mubr.f32.mxu0 %v356
      %432 = vmatmul.mubr.f32.gmra.mrb[0].mxu0 %v355
      %v433 = vpop.f32.mrb[0].mxu0
      %v434 = vadd.f32 0.0, %v433
      %v435 = vpop.f32.mrb[0].mxu0
      %436 = vmatprep.mubr.f32.mxu0 %v360
      %437 = vmatmul.mubr.f32.gmra.mrb[0].mxu0 %v359
      %v438 = vpop.f32.mrb[0].mxu0
      %v439 = vadd.f32 0.0, %v438
      %v440 = vpop.f32.mrb[0].mxu0
      %441 = vmatprep.mubr.f32.mxu0 %v364
      %442 = vmatmul.mubr.f32.gmra.mrb[0].mxu0 %v363
      %v443 = vpop.f32.mrb[0].mxu0
      %v444 = vadd.f32 0.0, %v443
      %v445 = vpop.f32.mrb[0].mxu0
      %446 = vdwg.mxu0
      %447 = vmatprep.subr.mxu0 0.0
      %448 = vmatpush1.msra.mxu0 %v323
      %449 = vmatprep.subr.mxu0 0.0
      %450 = vmatpush1.msra.mxu0 %v324
      %451 = vmatprep.subr.mxu0 0.0
      %452 = vmatpush1.msra.mxu0 %v325
      %453 = vmatprep.subr.mxu0 0.0
      %454 = vmatpush1.msra.mxu0 %v326
      %455 = vmatprep.subr.mxu0 0.0
      %456 = vmatpush1.msra.mxu0 %v327
      %457 = vmatprep.subr.mxu0 0.0
      %458 = vmatpush1.msra.mxu0 %v328
      %459 = vmatprep.subr.mxu0 0.0
      %460 = vmatpush1.msra.mxu0 %v329
      %461 = vmatprep.subr.mxu0 0.0
      %462 = vmatpush1.msra.mxu0 %v330
      %463 = vmatprep.subr.mxu0 0.0
      %464 = vmatpush1.msra.mxu0 %v331
      %465 = vmatprep.subr.mxu0 0.0
      %466 = vmatpush1.msra.mxu0 %v332
      %467 = vmatprep.subr.mxu0 0.0
      %468 = vmatpush1.msra.mxu0 %v333
      %469 = vmatprep.subr.mxu0 0.0
      %470 = vmatpush1.msra.mxu0 %v334
      %471 = vmatprep.subr.mxu0 0.0
      %472 = vmatpush1.msra.mxu0 %v335
      %473 = vmatprep.subr.mxu0 0.0
      %474 = vmatpush1.msra.mxu0 %v336
      %475 = vmatprep.subr.mxu0 0.0
      %476 = vmatpush1.msra.mxu0 %v337
      %477 = vmatprep.subr.mxu0 0.0
      %478 = vmatpush1.msra.mxu0 %v338
      %479 = vmatprep.subr.mxu0 0.0
      %480 = vmatpush1.msra.mxu0 %v339
      %481 = vmatprep.subr.mxu0 0.0
      %482 = vmatpush1.msra.mxu0 %v340
      %483 = vmatprep.subr.mxu0 0.0
      %484 = vmatpush1.msra.mxu0 %v341
      %485 = vmatprep.subr.mxu0 0.0
      %486 = vmatpush1.msra.mxu0 %v342
      %487 = vmatprep.subr.mxu0 0.0
      %488 = vmatpush1.msra.mxu0 %v343
      %489 = vmatprep.subr.mxu0 0.0
      %490 = vmatpush1.msra.mxu0 %v344
      %491 = vmatprep.subr.mxu0 0.0
      %492 = vmatpush1.msra.mxu0 %v345
      %493 = vmatprep.subr.mxu0 0.0
      %494 = vmatpush1.msra.mxu0 %v346
      %495 = vmatprep.subr.mxu0 0.0
      %496 = vmatpush1.msra.mxu0 %v347
      %497 = vmatprep.subr.mxu0 0.0
      %498 = vmatpush1.msra.mxu0 %v348
      %499 = vmatprep.subr.mxu0 0.0
      %500 = vmatpush1.msra.mxu0 %v349
      %501 = vmatprep.subr.mxu0 0.0
      %502 = vmatpush1.msra.mxu0 %v350
      %503 = vmatprep.subr.mxu0 0.0
      %504 = vmatpush1.msra.mxu0 %v351
      %505 = vmatprep.subr.mxu0 0.0
      %506 = vmatpush1.msra.mxu0 %v352
      %507 = vmatprep.subr.mxu0 0.0
      %508 = vmatpush1.msra.mxu0 %v353
      %509 = vmatprep.subr.mxu0 0.0
      %510 = vmatpush1.msra.mxu0 %v354
      %511 = vmatprep.mubr.f32.mxu0 %v358
      %512 = vmatmul.mubr.f32.gmra.mrb[0].mxu0 %v357
      %v513 = vpop.f32.mrb[0].mxu0
      %v514 = vadd.f32 %v434, %v513
      %v515 = vpop.f32.mrb[0].mxu0
      %516 = vmatprep.mubr.f32.mxu0 %v362
      %517 = vmatmul.mubr.f32.gmra.mrb[0].mxu0 %v361
      %v518 = vpop.f32.mrb[0].mxu0
      %v519 = vadd.f32 %v439, %v518
      %v520 = vpop.f32.mrb[0].mxu0
      %521 = vmatprep.mubr.f32.mxu0 %v366
      %522 = vmatmul.mubr.f32.gmra.mrb[0].mxu0 %v365
      %v523 = vpop.f32.mrb[0].mxu0
      %v524 = vadd.f32 %v444, %v523
      %v525 = vpop.f32.mrb[0].mxu0
      %526 = vdwg.mxu0
      %v528 = vrot.slane %v146, 7
      %v530 = vmul.f32 %v146, %v528
      %v531 = vrot.slane %v146, 6
      %v533 = vmul.f32 %v530, %v531
      %v534 = vlaneseq
      %v535 = vshrl.u32 %v534, 7
      %v536 = vsub.s32 2, %v535
      %v537 = vrot.slane %v533, %v536
      %v538 = vmul.f32 %v537, %v514
      %v540 = vrot.slane %v150, 6
      %v542 = vmul.f32 %v530, %v540
      %v543 = vlaneseq
      %v544 = vshrl.u32 %v543, 7
      %v545 = vsub.s32 2, %v544
      %v546 = vrot.slane %v542, %v545
      %v547 = vmul.f32 %v546, %v514
      %v549 = vrot.slane %v547, 3
      %v551 = vadd.f32 %v538, %v549
      %v552 = vrot.slane %v150, 7
      %v554 = vmul.f32 %v146, %v552
      %v555 = vmul.f32 %v554, %v531
      %v556 = vlaneseq
      %v557 = vshrl.u32 %v556, 7
      %v558 = vsub.s32 2, %v557
      %v559 = vrot.slane %v555, %v558
      %v560 = vmul.f32 %v559, %v514
      %v561 = vmul.f32 %v559, %v519
      %vm564 = vcmask 1041408
      %v565 = vrot.slane %v560, 6
      %v566 = vrot.slane %v561, 6
      %v567 = vsel %vm564, %v565, %v566
      %v569 = vadd.f32 %v551, %v567
      %v570 = vmul.f32 %v554, %v540
      %v571 = vlaneseq
      %v572 = vshrl.u32 %v571, 7
      %v573 = vsub.s32 2, %v572
      %v574 = vrot.slane %v570, %v573
      %v575 = vmul.f32 %v574, %v519
      %v577 = vrot.slane %v575, 1
      %v579 = vadd.f32 %v569, %v577
      %v580 = vmul.f32 %v150, %v528
      %v581 = vmul.f32 %v580, %v531
      %v582 = vlaneseq
      %v583 = vshrl.u32 %v582, 7
      %v584 = vsub.s32 2, %v583
      %v585 = vrot.slane %v581, %v584
      %v586 = vmul.f32 %v585, %v519
      %v588 = vrot.slane %v586, 4
      %v590 = vadd.f32 %v579, %v588
      %v591 = vmul.f32 %v580, %v540
      %v592 = vlaneseq
      %v593 = vshrl.u32 %v592, 7
      %v594 = vsub.s32 2, %v593
      %v595 = vrot.slane %v591, %v594
      %v596 = vmul.f32 %v595, %v519
      %v597 = vmul.f32 %v595, %v524
      %vm600 = vcmask 1040384
      %v601 = vrot.slane %v596, 7
      %v602 = vrot.slane %v597, 7
      %v603 = vsel %vm600, %v601, %v602
      %v605 = vadd.f32 %v590, %v603
      %v606 = vmul.f32 %v150, %v552
      %v607 = vmul.f32 %v606, %v531
      %v608 = vlaneseq
      %v609 = vshrl.u32 %v608, 7
      %v610 = vsub.s32 2, %v609
      %v611 = vrot.slane %v607, %v610
      %v612 = vmul.f32 %v611, %v524
      %v614 = vrot.slane %v612, 2
      %v616 = vadd.f32 %v605, %v614
      %v617 = vmul.f32 %v606, %v540
      %v618 = vlaneseq
      %v619 = vshrl.u32 %v618, 7
      %v620 = vsub.s32 2, %v619
      %v621 = vrot.slane %v617, %v620
      %v622 = vmul.f32 %v621, %v524
      %v624 = vrot.slane %v622, 5
      %v626 = vadd.f32 %v616, %v624
      %627 = vst [vmem:[%s138] sm:$0x7] %v626
      %p628 = scmp.lt.s32.totalorder %s13, 3
      %s629 = scalar_select %p628, %s13, 3
      %s630 = smul.addr %s629, 4
      %s631 = scalar_lea.vmem %s2, %s630
      // Predicated region
      $region29: #{diffeomorphic_transform.7} parent=27 // pred_check
        %p632 = pneg %p78
      $region30: #{diffeomorphic_transform.7} parent=27 // pred_check_branch
        %634 = sbr.rel (%p632) target = $region32
      $region31: #{diffeomorphic_transform.7} parent=27 // pred_region
        _
      $region32: #{diffeomorphic_transform.7} parent=27 // pred_fallthru
        _
    $region28: #{diffeomorphic_transform.7} parent=5 // pred_fallthru
      _
    %p635 = scmp.le.s32.totalorder 2, %s8
    // Predicated region
    $region33: #{diffeomorphic_transform.7} parent=5 // pred_check
      %p636 = pneg %p635
    $region34: #{diffeomorphic_transform.7} parent=5 // pred_check_branch
      %638 = sbr.rel (%p636) target = $region36
    $region35: #{diffeomorphic_transform.7} parent=5 // pred_region
      %s639 = ssub.s32 %s8, 2
      // Predicated region
      $region37: #{diffeomorphic_transform.7} parent=35 // pred_check
        %p640 = pneg %p84
      $region38: #{diffeomorphic_transform.7} parent=35 // pred_check_branch
        %642 = sbr.rel (%p640) target = $region40
      $region39: #{diffeomorphic_transform.7} parent=35 // pred_region
        %p643 = scmp.lt.s32.totalorder %s14, 3
        %s644 = scalar_select %p643, %s14, 3
        %s645 = smul.addr %s644, 4
        %s646 = scalar_lea.vmem %s2, %s645
      $region40: #{diffeomorphic_transform.7} parent=35 // pred_fallthru
        _
    $region36: #{diffeomorphic_transform.7} parent=5 // pred_fallthru
      _
  $region6: #{diffeomorphic_transform.7} parent=0 // loop_footer
    %s12 = sadd.s32 1, %s8
  $region7: #{diffeomorphic_transform.7} parent=0 // loop_footer_branch
    %7 = sbr.rel target = $region3
  $region8: #{diffeomorphic_transform.7} parent=0 // loop_exit
    _

</llo_original>
